<compile_context>
chip_gen: v6e
topology: v6e:2x2x1
jax: 0.10.0
libtpu: 0.0.40
codegen_flags: <defaults>
</compile_context>

<pallas_src>
import functools

import jax
import jax.numpy as jnp
from jax import lax
from jax.experimental import pallas as pl
from jax.experimental.pallas import tpu as pltpu

input_dim = 28
hidden_dim = 100
layer_dim = 1      # the kernel implements exactly one LSTM layer
output_dim = 10

LANE = 128
SUBLANE = 8


def _round_up(n, m):
    return ((n + m - 1) // m) * m


def lstm_kernel(x_ref, w_ref, b_ref, out_ref, xp_scr, *, T, B, D_pad, Hp, bf16_gates):
    G = 4 * Hp

    # Static, sublane-aligned views into the packed bf16 weight slab.
    wih = w_ref[0:D_pad, :]                        # (D_pad, 4Hp)
    whh = w_ref[D_pad:D_pad + Hp, :]               # (Hp, 4Hp) — loaded ONCE, shared by all steps
    wfc = w_ref[D_pad + Hp:D_pad + 2 * Hp, :]      # (Hp, 4Hp) — fc weights, cols >= O are zero

    b_gate = b_ref[0:1, :]                         # (1, 4Hp) f32  (gate bias, pad lanes zero)
    b_fc = b_ref[1:2, :]                           # (1, 4Hp) f32  (fc bias, cols >= O zero)

    # ---- Phase 1: hoisted input projection for all T steps at once ----------
    xp_scr[...] = jnp.dot(x_ref[...].astype(jnp.bfloat16), wih,
                          preferred_element_type=jnp.float32) + b_gate   # (T*B, 4Hp) f32

    gate_dtype = jnp.bfloat16 if bf16_gates else jnp.float32

    # ---- Phase 2: recurrence; h carried in bf16, c in f32 --------------------
    def step(t, carry):
        h, c = carry                               # h: (B, Hp) bf16, c: (B, Hp) f32
        row0 = pl.multiple_of(t * B, B)            # sublane-aligned
        xp_t = xp_scr[pl.ds(row0, B), :]           # (B, 4Hp) f32
        gates = (xp_t + jnp.dot(h, whh, preferred_element_type=jnp.float32)
                 ).astype(gate_dtype)
        # PyTorch gate order: i, f, g, o — slices are 128-lane aligned.
        i = jax.nn.sigmoid(gates[:, 0 * Hp:1 * Hp])
        f = jax.nn.sigmoid(gates[:, 1 * Hp:2 * Hp])
        g = jnp.tanh(gates[:, 2 * Hp:3 * Hp])
        o = jax.nn.sigmoid(gates[:, 3 * Hp:4 * Hp])
        c_new = (f.astype(jnp.float32) * c
                 + i.astype(jnp.float32) * g.astype(jnp.float32))        # f32 state
        h_new = (o * jnp.tanh(c_new.astype(gate_dtype))).astype(jnp.bfloat16)
        return h_new, c_new

    h0 = jnp.zeros((B, Hp), jnp.bfloat16)
    c0 = jnp.zeros((B, Hp), jnp.float32)
    h_final, _ = lax.fori_loop(0, T, step, (h0, c0),
                               unroll=True if T <= 16 else 8)

    # ---- Phase 3: fused fc head (bf16 MXU, f32 accum + f32 bias) -------------
    out_ref[...] = (jnp.dot(h_final, wfc, preferred_element_type=jnp.float32)
                    + b_fc)                        # (B, 4Hp); cols >= O are exactly 0


def lstm_forward(x, w_ih, w_hh, b_ih, b_hh, w_fc, b_fc):
    """Single-layer LSTM (batch_first, zero initial h/c) followed by Linear on the
    last hidden state.

    PyTorch parameter shapes:
      x: (B, T, D); w_ih: (4H, D); w_hh: (4H, H); b_ih, b_hh: (4H,);
      w_fc: (O, H); b_fc: (O,).   Returns (B, O) float32.
    """
    B, T, D = x.shape
    H = w_hh.shape[1]
    O = w_fc.shape[0]
    assert w_ih.shape == (4 * H, D) and w_hh.shape == (4 * H, H)
    assert b_ih.shape == (4 * H,) and b_hh.shape == (4 * H,)

    Hp = _round_up(H, LANE)
    D_pad = _round_up(D, SUBLANE)
    G = 4 * Hp

    def pad_gate_cols(w):        # (rows, 4H) -> (rows, 4Hp): zero-pad each gate block
        r = w.shape[0]
        return jnp.pad(w.reshape(r, 4, H),
                       ((0, 0), (0, 0), (0, Hp - H))).reshape(r, G)

    # One bf16 weight slab: [W_ih (D_pad, G); W_hh (Hp, G); W_fc (Hp, G)].
    wih_p = jnp.pad(pad_gate_cols(w_ih.T), ((0, D_pad - D), (0, 0)))     # (D_pad, G)
    whh_p = jnp.pad(pad_gate_cols(w_hh.T), ((0, Hp - H), (0, 0)))        # (Hp, G)
    wfc_p = jnp.pad(w_fc.T, ((0, Hp - H), (0, G - O)))                   # (Hp, G)
    w_slab = jnp.concatenate([wih_p, whh_p, wfc_p], axis=0).astype(jnp.bfloat16)

    # One f32 bias buffer: row 0 = gate bias (padded per gate), row 1 = fc bias.
    b_gate = pad_gate_cols((b_ih + b_hh).reshape(1, -1))                 # (1, G)
    b_fc_p = jnp.pad(b_fc.reshape(1, -1), ((0, 0), (0, G - O)))          # (1, G)
    b_slab = jnp.concatenate([b_gate, b_fc_p], axis=0).astype(jnp.float32)

    # (B, T, D) -> time-major (T*B, D_pad): row t*B + b holds x[b, t].
    x_tb = jnp.pad(jnp.transpose(x, (1, 0, 2)).reshape(T * B, D),
                   ((0, 0), (0, D_pad - D))).astype(jnp.float32)

    # bf16 gate nonlinearities only where the VPU/EUP are bf16-capable (v6e/v7x).
    kind = jax.devices()[0].device_kind.lower()
    bf16_gates = any(tag in kind for tag in ("v6", "v7", "7x"))

    kernel = functools.partial(lstm_kernel, T=T, B=B, D_pad=D_pad, Hp=Hp,
                               bf16_gates=bf16_gates)
    out_full = pl.pallas_call(
        kernel,
        out_shape=jax.ShapeDtypeStruct((B, G), jnp.float32),
        # no grid: single invocation; total footprint (x + weights + Xp) < 0.5 MiB
        scratch_shapes=[pltpu.VMEM((T * B, G), jnp.float32)],            # Xp buffer
    )(x_tb, w_slab, b_slab)
    return out_full[:, :O]


def lstm_reference(x, w_ih, w_hh, b_ih, b_hh, w_fc, b_fc):
    """Pure-JAX f32 reference of the same forward pass (for correctness check)."""
    B, T, D = x.shape
    H = w_hh.shape[1]
    wih_t, whh_t = w_ih.T, w_hh.T
    b = (b_ih + b_hh).reshape(1, -1)

    def step(carry, x_t):
        h, c = carry
        gates = x_t @ wih_t + h @ whh_t + b
        i = jax.nn.sigmoid(gates[:, 0:H])
        f = jax.nn.sigmoid(gates[:, H:2 * H])
        g = jnp.tanh(gates[:, 2 * H:3 * H])
        o = jax.nn.sigmoid(gates[:, 3 * H:4 * H])
        c = f * c + i * g
        h = o * jnp.tanh(c)
        return (h, c), None

    h0 = jnp.zeros((B, H), jnp.float32)
    c0 = jnp.zeros((B, H), jnp.float32)
    (h, _), _ = jax.lax.scan(step, (h0, c0), jnp.swapaxes(x, 0, 1))
    return h @ w_fc.T + b_fc.reshape(1, -1)


if __name__ == "__main__":
    assert layer_dim == 1, "kernel implements exactly one LSTM layer (zero init h0/c0)"

    B, T = 8, 8
    key = jax.random.PRNGKey(0)
    kx, k1, k2, k3, k4, k5, k6 = jax.random.split(key, 7)

    scale = 0.1
    x = jax.random.normal(kx, (B, T, input_dim), jnp.float32)
    # nn.LSTM parameter shapes: weight_ih_l0 (4H, D), weight_hh_l0 (4H, H),
    # bias_ih_l0 (4H,), bias_hh_l0 (4H,); nn.Linear: weight (O, H), bias (O,).
    w_ih = scale * jax.random.normal(k1, (4 * hidden_dim, input_dim), jnp.float32)
    w_hh = scale * jax.random.normal(k2, (4 * hidden_dim, hidden_dim), jnp.float32)
    b_ih = scale * jax.random.normal(k3, (4 * hidden_dim,), jnp.float32)
    b_hh = scale * jax.random.normal(k4, (4 * hidden_dim,), jnp.float32)
    w_fc = scale * jax.random.normal(k5, (output_dim, hidden_dim), jnp.float32)
    b_fc = scale * jax.random.normal(k6, (output_dim,), jnp.float32)

    out = jax.block_until_ready(lstm_forward(x, w_ih, w_hh, b_ih, b_hh, w_fc, b_fc))
    ref = lstm_reference(x, w_ih, w_hh, b_ih, b_hh, w_fc, b_fc)

    assert out.shape == (B, output_dim)
    # bf16 matmul operands (+ bf16 gate math on v6e/v7x) with f32 state/accum.
    max_diff = float(jnp.max(jnp.abs(out - ref)))
    assert jnp.allclose(out, ref, atol=2e-2, rtol=2e-2), \
        f"mismatch vs JAX reference (max abs diff {max_diff})"

    print("KERNEL_OK")
</pallas_src>

<mosaic_0001>
module attributes {stable_mosaic.version = 11 : i64} {
  func.func @lstm_kernel(%arg0: memref<64x32xf32, #tpu.memory_space<vmem>>, %arg1: memref<288x512xbf16, #tpu.memory_space<vmem>>, %arg2: memref<2x512xf32, #tpu.memory_space<vmem>>, %arg3: memref<8x512xf32, #tpu.memory_space<vmem>>, %arg4: memref<64x512xf32, #tpu.memory_space<vmem>>) attributes {dimension_semantics = [], scalar_prefetch = 0 : i64, scratch_operands = 1 : i64, tpu.core_type = #tpu.core_type<tc>} {
    %c0 = arith.constant 0 : index
    %c0_0 = arith.constant 0 : index
    %0 = vector.load %arg1[%c0, %c0_0] : memref<288x512xbf16, #tpu.memory_space<vmem>>, vector<32x512xbf16>
    %c32 = arith.constant 32 : index
    %c0_1 = arith.constant 0 : index
    %1 = vector.load %arg1[%c32, %c0_1] : memref<288x512xbf16, #tpu.memory_space<vmem>>, vector<128x512xbf16>
    %c160 = arith.constant 160 : index
    %c0_2 = arith.constant 0 : index
    %2 = vector.load %arg1[%c160, %c0_2] : memref<288x512xbf16, #tpu.memory_space<vmem>>, vector<128x512xbf16>
    %c0_3 = arith.constant 0 : index
    %c0_4 = arith.constant 0 : index
    %3 = vector.load %arg2[%c0_3, %c0_4] : memref<2x512xf32, #tpu.memory_space<vmem>>, vector<1x512xf32>
    %c1 = arith.constant 1 : index
    %c0_5 = arith.constant 0 : index
    %4 = vector.load %arg2[%c1, %c0_5] : memref<2x512xf32, #tpu.memory_space<vmem>>, vector<1x512xf32>
    %c0_6 = arith.constant 0 : index
    %c0_7 = arith.constant 0 : index
    %5 = vector.load %arg0[%c0_6, %c0_7] : memref<64x32xf32, #tpu.memory_space<vmem>>, vector<64x32xf32>
    %6 = arith.truncf %5 : vector<64x32xf32> to vector<64x32xbf16>
    %cst = arith.constant dense<0.000000e+00> : vector<64x512xf32>
    %7 = tpu.matmul %6, %0, %cst {dimension_numbers = #tpu.dot_dimension_numbers<[1], [0], [0], [1], [0, 0, 1, 1], [], []>} : vector<64x32xbf16>, vector<32x512xbf16>, vector<64x512xf32> -> vector<64x512xf32>
    %8 = vector.broadcast %3 : vector<1x512xf32> to vector<64x512xf32>
    %9 = arith.addf %7, %8 : vector<64x512xf32>
    %c0_8 = arith.constant 0 : index
    %c0_9 = arith.constant 0 : index
    %10 = vector.load %arg4[%c0_8, %c0_9] : memref<64x512xf32, #tpu.memory_space<vmem>>, vector<64x512xf32>
    tpu.vector_store %arg4[%c0_8, %c0_9], %9 {strides = array<i32>} : memref<64x512xf32, #tpu.memory_space<vmem>>, vector<64x512xf32>,
    %cst_10 = arith.constant 0.000000e+00 : bf16
    %11 = vector.broadcast %cst_10 : bf16 to vector<8x128xbf16>
    %cst_11 = arith.constant 0.000000e+00 : f32
    %12 = vector.broadcast %cst_11 : f32 to vector<8x128xf32>
    %c0_i32 = arith.constant 0 : i32
    %c8_i32 = arith.constant 8 : i32
    %13 = arith.muli %c0_i32, %c8_i32 : i32
    %14 = tpu.assume_multiple %13, 8 : i32
    %15 = arith.index_cast %14 : i32 to index
    %c0_12 = arith.constant 0 : index
    %16 = vector.load %arg4[%15, %c0_12] : memref<64x512xf32, #tpu.memory_space<vmem>>, vector<8x512xf32>
    %cst_13 = arith.constant dense<0.000000e+00> : vector<8x512xf32>
    %17 = tpu.matmul %11, %1, %cst_13 {dimension_numbers = #tpu.dot_dimension_numbers<[1], [0], [0], [1], [0, 0, 1, 1], [], []>} : vector<8x128xbf16>, vector<128x512xbf16>, vector<8x512xf32> -> vector<8x512xf32>
    %18 = arith.addf %16, %17 : vector<8x512xf32>
    %19 = vector.extract_strided_slice %18 {offsets = [0, 0], sizes = [8, 128], strides = [1, 1]} : vector<8x512xf32> to vector<8x128xf32>
    %20 = arith.negf %19 : vector<8x128xf32>
    %21 = math.exp %20 : vector<8x128xf32>
    %cst_14 = arith.constant 1.000000e+00 : f32
    %22 = vector.broadcast %cst_14 : f32 to vector<8x128xf32>
    %23 = arith.addf %22, %21 : vector<8x128xf32>
    %24 = arith.divf %22, %23 : vector<8x128xf32>
    %25 = vector.extract_strided_slice %18 {offsets = [0, 128], sizes = [8, 128], strides = [1, 1]} : vector<8x512xf32> to vector<8x128xf32>
    %26 = arith.negf %25 : vector<8x128xf32>
    %27 = math.exp %26 : vector<8x128xf32>
    %cst_15 = arith.constant 1.000000e+00 : f32
    %28 = vector.broadcast %cst_15 : f32 to vector<8x128xf32>
    %29 = arith.addf %28, %27 : vector<8x128xf32>
    %30 = arith.divf %28, %29 : vector<8x128xf32>
    %31 = vector.extract_strided_slice %18 {offsets = [0, 256], sizes = [8, 128], strides = [1, 1]} : vector<8x512xf32> to vector<8x128xf32>
    %32 = math.tanh %31 : vector<8x128xf32>
    %33 = vector.extract_strided_slice %18 {offsets = [0, 384], sizes = [8, 128], strides = [1, 1]} : vector<8x512xf32> to vector<8x128xf32>
    %34 = arith.negf %33 : vector<8x128xf32>
    %35 = math.exp %34 : vector<8x128xf32>
    %cst_16 = arith.constant 1.000000e+00 : f32
    %36 = vector.broadcast %cst_16 : f32 to vector<8x128xf32>
    %37 = arith.addf %36, %35 : vector<8x128xf32>
    %38 = arith.divf %36, %37 : vector<8x128xf32>
    %39 = arith.mulf %30, %12 : vector<8x128xf32>
    %40 = arith.mulf %24, %32 : vector<8x128xf32>
    %41 = arith.addf %39, %40 : vector<8x128xf32>
    %42 = math.tanh %41 : vector<8x128xf32>
    %43 = arith.mulf %38, %42 : vector<8x128xf32>
    %44 = arith.truncf %43 : vector<8x128xf32> to vector<8x128xbf16>
    %c1_i32 = arith.constant 1 : i32
    %c8_i32_17 = arith.constant 8 : i32
    %45 = arith.muli %c1_i32, %c8_i32_17 : i32
    %46 = tpu.assume_multiple %45, 8 : i32
    %47 = arith.index_cast %46 : i32 to index
    %c0_18 = arith.constant 0 : index
    %48 = vector.load %arg4[%47, %c0_18] : memref<64x512xf32, #tpu.memory_space<vmem>>, vector<8x512xf32>
    %cst_19 = arith.constant dense<0.000000e+00> : vector<8x512xf32>
    %49 = tpu.matmul %44, %1, %cst_19 {dimension_numbers = #tpu.dot_dimension_numbers<[1], [0], [0], [1], [0, 0, 1, 1], [], []>} : vector<8x128xbf16>, vector<128x512xbf16>, vector<8x512xf32> -> vector<8x512xf32>
    %50 = arith.addf %48, %49 : vector<8x512xf32>
    %51 = vector.extract_strided_slice %50 {offsets = [0, 0], sizes = [8, 128], strides = [1, 1]} : vector<8x512xf32> to vector<8x128xf32>
    %52 = arith.negf %51 : vector<8x128xf32>
    %53 = math.exp %52 : vector<8x128xf32>
    %cst_20 = arith.constant 1.000000e+00 : f32
    %54 = vector.broadcast %cst_20 : f32 to vector<8x128xf32>
    %55 = arith.addf %54, %53 : vector<8x128xf32>
    %56 = arith.divf %54, %55 : vector<8x128xf32>
    %57 = vector.extract_strided_slice %50 {offsets = [0, 128], sizes = [8, 128], strides = [1, 1]} : vector<8x512xf32> to vector<8x128xf32>
    %58 = arith.negf %57 : vector<8x128xf32>
    %59 = math.exp %58 : vector<8x128xf32>
    %cst_21 = arith.constant 1.000000e+00 : f32
    %60 = vector.broadcast %cst_21 : f32 to vector<8x128xf32>
    %61 = arith.addf %60, %59 : vector<8x128xf32>
    %62 = arith.divf %60, %61 : vector<8x128xf32>
    %63 = vector.extract_strided_slice %50 {offsets = [0, 256], sizes = [8, 128], strides = [1, 1]} : vector<8x512xf32> to vector<8x128xf32>
    %64 = math.tanh %63 : vector<8x128xf32>
    %65 = vector.extract_strided_slice %50 {offsets = [0, 384], sizes = [8, 128], strides = [1, 1]} : vector<8x512xf32> to vector<8x128xf32>
    %66 = arith.negf %65 : vector<8x128xf32>
    %67 = math.exp %66 : vector<8x128xf32>
    %cst_22 = arith.constant 1.000000e+00 : f32
    %68 = vector.broadcast %cst_22 : f32 to vector<8x128xf32>
    %69 = arith.addf %68, %67 : vector<8x128xf32>
    %70 = arith.divf %68, %69 : vector<8x128xf32>
    %71 = arith.mulf %62, %41 : vector<8x128xf32>
    %72 = arith.mulf %56, %64 : vector<8x128xf32>
    %73 = arith.addf %71, %72 : vector<8x128xf32>
    %74 = math.tanh %73 : vector<8x128xf32>
    %75 = arith.mulf %70, %74 : vector<8x128xf32>
    %76 = arith.truncf %75 : vector<8x128xf32> to vector<8x128xbf16>
    %c2_i32 = arith.constant 2 : i32
    %c8_i32_23 = arith.constant 8 : i32
    %77 = arith.muli %c2_i32, %c8_i32_23 : i32
    %78 = tpu.assume_multiple %77, 8 : i32
    %79 = arith.index_cast %78 : i32 to index
    %c0_24 = arith.constant 0 : index
    %80 = vector.load %arg4[%79, %c0_24] : memref<64x512xf32, #tpu.memory_space<vmem>>, vector<8x512xf32>
    %cst_25 = arith.constant dense<0.000000e+00> : vector<8x512xf32>
    %81 = tpu.matmul %76, %1, %cst_25 {dimension_numbers = #tpu.dot_dimension_numbers<[1], [0], [0], [1], [0, 0, 1, 1], [], []>} : vector<8x128xbf16>, vector<128x512xbf16>, vector<8x512xf32> -> vector<8x512xf32>
    %82 = arith.addf %80, %81 : vector<8x512xf32>
    %83 = vector.extract_strided_slice %82 {offsets = [0, 0], sizes = [8, 128], strides = [1, 1]} : vector<8x512xf32> to vector<8x128xf32>
    %84 = arith.negf %83 : vector<8x128xf32>
    %85 = math.exp %84 : vector<8x128xf32>
    %cst_26 = arith.constant 1.000000e+00 : f32
    %86 = vector.broadcast %cst_26 : f32 to vector<8x128xf32>
    %87 = arith.addf %86, %85 : vector<8x128xf32>
    %88 = arith.divf %86, %87 : vector<8x128xf32>
    %89 = vector.extract_strided_slice %82 {offsets = [0, 128], sizes = [8, 128], strides = [1, 1]} : vector<8x512xf32> to vector<8x128xf32>
    %90 = arith.negf %89 : vector<8x128xf32>
    %91 = math.exp %90 : vector<8x128xf32>
    %cst_27 = arith.constant 1.000000e+00 : f32
    %92 = vector.broadcast %cst_27 : f32 to vector<8x128xf32>
    %93 = arith.addf %92, %91 : vector<8x128xf32>
    %94 = arith.divf %92, %93 : vector<8x128xf32>
    %95 = vector.extract_strided_slice %82 {offsets = [0, 256], sizes = [8, 128], strides = [1, 1]} : vector<8x512xf32> to vector<8x128xf32>
    %96 = math.tanh %95 : vector<8x128xf32>
    %97 = vector.extract_strided_slice %82 {offsets = [0, 384], sizes = [8, 128], strides = [1, 1]} : vector<8x512xf32> to vector<8x128xf32>
    %98 = arith.negf %97 : vector<8x128xf32>
    %99 = math.exp %98 : vector<8x128xf32>
    %cst_28 = arith.constant 1.000000e+00 : f32
    %100 = vector.broadcast %cst_28 : f32 to vector<8x128xf32>
    %101 = arith.addf %100, %99 : vector<8x128xf32>
    %102 = arith.divf %100, %101 : vector<8x128xf32>
    %103 = arith.mulf %94, %73 : vector<8x128xf32>
    %104 = arith.mulf %88, %96 : vector<8x128xf32>
    %105 = arith.addf %103, %104 : vector<8x128xf32>
    %106 = math.tanh %105 : vector<8x128xf32>
    %107 = arith.mulf %102, %106 : vector<8x128xf32>
    %108 = arith.truncf %107 : vector<8x128xf32> to vector<8x128xbf16>
    %c3_i32 = arith.constant 3 : i32
    %c8_i32_29 = arith.constant 8 : i32
    %109 = arith.muli %c3_i32, %c8_i32_29 : i32
    %110 = tpu.assume_multiple %109, 8 : i32
    %111 = arith.index_cast %110 : i32 to index
    %c0_30 = arith.constant 0 : index
    %112 = vector.load %arg4[%111, %c0_30] : memref<64x512xf32, #tpu.memory_space<vmem>>, vector<8x512xf32>
    %cst_31 = arith.constant dense<0.000000e+00> : vector<8x512xf32>
    %113 = tpu.matmul %108, %1, %cst_31 {dimension_numbers = #tpu.dot_dimension_numbers<[1], [0], [0], [1], [0, 0, 1, 1], [], []>} : vector<8x128xbf16>, vector<128x512xbf16>, vector<8x512xf32> -> vector<8x512xf32>
    %114 = arith.addf %112, %113 : vector<8x512xf32>
    %115 = vector.extract_strided_slice %114 {offsets = [0, 0], sizes = [8, 128], strides = [1, 1]} : vector<8x512xf32> to vector<8x128xf32>
    %116 = arith.negf %115 : vector<8x128xf32>
    %117 = math.exp %116 : vector<8x128xf32>
    %cst_32 = arith.constant 1.000000e+00 : f32
    %118 = vector.broadcast %cst_32 : f32 to vector<8x128xf32>
    %119 = arith.addf %118, %117 : vector<8x128xf32>
    %120 = arith.divf %118, %119 : vector<8x128xf32>
    %121 = vector.extract_strided_slice %114 {offsets = [0, 128], sizes = [8, 128], strides = [1, 1]} : vector<8x512xf32> to vector<8x128xf32>
    %122 = arith.negf %121 : vector<8x128xf32>
    %123 = math.exp %122 : vector<8x128xf32>
    %cst_33 = arith.constant 1.000000e+00 : f32
    %124 = vector.broadcast %cst_33 : f32 to vector<8x128xf32>
    %125 = arith.addf %124, %123 : vector<8x128xf32>
    %126 = arith.divf %124, %125 : vector<8x128xf32>
    %127 = vector.extract_strided_slice %114 {offsets = [0, 256], sizes = [8, 128], strides = [1, 1]} : vector<8x512xf32> to vector<8x128xf32>
    %128 = math.tanh %127 : vector<8x128xf32>
    %129 = vector.extract_strided_slice %114 {offsets = [0, 384], sizes = [8, 128], strides = [1, 1]} : vector<8x512xf32> to vector<8x128xf32>
    %130 = arith.negf %129 : vector<8x128xf32>
    %131 = math.exp %130 : vector<8x128xf32>
    %cst_34 = arith.constant 1.000000e+00 : f32
    %132 = vector.broadcast %cst_34 : f32 to vector<8x128xf32>
    %133 = arith.addf %132, %131 : vector<8x128xf32>
    %134 = arith.divf %132, %133 : vector<8x128xf32>
    %135 = arith.mulf %126, %105 : vector<8x128xf32>
    %136 = arith.mulf %120, %128 : vector<8x128xf32>
    %137 = arith.addf %135, %136 : vector<8x128xf32>
    %138 = math.tanh %137 : vector<8x128xf32>
    %139 = arith.mulf %134, %138 : vector<8x128xf32>
    %140 = arith.truncf %139 : vector<8x128xf32> to vector<8x128xbf16>
    %c4_i32 = arith.constant 4 : i32
    %c8_i32_35 = arith.constant 8 : i32
    %141 = arith.muli %c4_i32, %c8_i32_35 : i32
    %142 = tpu.assume_multiple %141, 8 : i32
    %143 = arith.index_cast %142 : i32 to index
    %c0_36 = arith.constant 0 : index
    %144 = vector.load %arg4[%143, %c0_36] : memref<64x512xf32, #tpu.memory_space<vmem>>, vector<8x512xf32>
    %cst_37 = arith.constant dense<0.000000e+00> : vector<8x512xf32>
    %145 = tpu.matmul %140, %1, %cst_37 {dimension_numbers = #tpu.dot_dimension_numbers<[1], [0], [0], [1], [0, 0, 1, 1], [], []>} : vector<8x128xbf16>, vector<128x512xbf16>, vector<8x512xf32> -> vector<8x512xf32>
    %146 = arith.addf %144, %145 : vector<8x512xf32>
    %147 = vector.extract_strided_slice %146 {offsets = [0, 0], sizes = [8, 128], strides = [1, 1]} : vector<8x512xf32> to vector<8x128xf32>
    %148 = arith.negf %147 : vector<8x128xf32>
    %149 = math.exp %148 : vector<8x128xf32>
    %cst_38 = arith.constant 1.000000e+00 : f32
    %150 = vector.broadcast %cst_38 : f32 to vector<8x128xf32>
    %151 = arith.addf %150, %149 : vector<8x128xf32>
    %152 = arith.divf %150, %151 : vector<8x128xf32>
    %153 = vector.extract_strided_slice %146 {offsets = [0, 128], sizes = [8, 128], strides = [1, 1]} : vector<8x512xf32> to vector<8x128xf32>
    %154 = arith.negf %153 : vector<8x128xf32>
    %155 = math.exp %154 : vector<8x128xf32>
    %cst_39 = arith.constant 1.000000e+00 : f32
    %156 = vector.broadcast %cst_39 : f32 to vector<8x128xf32>
    %157 = arith.addf %156, %155 : vector<8x128xf32>
    %158 = arith.divf %156, %157 : vector<8x128xf32>
    %159 = vector.extract_strided_slice %146 {offsets = [0, 256], sizes = [8, 128], strides = [1, 1]} : vector<8x512xf32> to vector<8x128xf32>
    %160 = math.tanh %159 : vector<8x128xf32>
    %161 = vector.extract_strided_slice %146 {offsets = [0, 384], sizes = [8, 128], strides = [1, 1]} : vector<8x512xf32> to vector<8x128xf32>
    %162 = arith.negf %161 : vector<8x128xf32>
    %163 = math.exp %162 : vector<8x128xf32>
    %cst_40 = arith.constant 1.000000e+00 : f32
    %164 = vector.broadcast %cst_40 : f32 to vector<8x128xf32>
    %165 = arith.addf %164, %163 : vector<8x128xf32>
    %166 = arith.divf %164, %165 : vector<8x128xf32>
    %167 = arith.mulf %158, %137 : vector<8x128xf32>
    %168 = arith.mulf %152, %160 : vector<8x128xf32>
    %169 = arith.addf %167, %168 : vector<8x128xf32>
    %170 = math.tanh %169 : vector<8x128xf32>
    %171 = arith.mulf %166, %170 : vector<8x128xf32>
    %172 = arith.truncf %171 : vector<8x128xf32> to vector<8x128xbf16>
    %c5_i32 = arith.constant 5 : i32
    %c8_i32_41 = arith.constant 8 : i32
    %173 = arith.muli %c5_i32, %c8_i32_41 : i32
    %174 = tpu.assume_multiple %173, 8 : i32
    %175 = arith.index_cast %174 : i32 to index
    %c0_42 = arith.constant 0 : index
    %176 = vector.load %arg4[%175, %c0_42] : memref<64x512xf32, #tpu.memory_space<vmem>>, vector<8x512xf32>
    %cst_43 = arith.constant dense<0.000000e+00> : vector<8x512xf32>
    %177 = tpu.matmul %172, %1, %cst_43 {dimension_numbers = #tpu.dot_dimension_numbers<[1], [0], [0], [1], [0, 0, 1, 1], [], []>} : vector<8x128xbf16>, vector<128x512xbf16>, vector<8x512xf32> -> vector<8x512xf32>
    %178 = arith.addf %176, %177 : vector<8x512xf32>
    %179 = vector.extract_strided_slice %178 {offsets = [0, 0], sizes = [8, 128], strides = [1, 1]} : vector<8x512xf32> to vector<8x128xf32>
    %180 = arith.negf %179 : vector<8x128xf32>
    %181 = math.exp %180 : vector<8x128xf32>
    %cst_44 = arith.constant 1.000000e+00 : f32
    %182 = vector.broadcast %cst_44 : f32 to vector<8x128xf32>
    %183 = arith.addf %182, %181 : vector<8x128xf32>
    %184 = arith.divf %182, %183 : vector<8x128xf32>
    %185 = vector.extract_strided_slice %178 {offsets = [0, 128], sizes = [8, 128], strides = [1, 1]} : vector<8x512xf32> to vector<8x128xf32>
    %186 = arith.negf %185 : vector<8x128xf32>
    %187 = math.exp %186 : vector<8x128xf32>
    %cst_45 = arith.constant 1.000000e+00 : f32
    %188 = vector.broadcast %cst_45 : f32 to vector<8x128xf32>
    %189 = arith.addf %188, %187 : vector<8x128xf32>
    %190 = arith.divf %188, %189 : vector<8x128xf32>
    %191 = vector.extract_strided_slice %178 {offsets = [0, 256], sizes = [8, 128], strides = [1, 1]} : vector<8x512xf32> to vector<8x128xf32>
    %192 = math.tanh %191 : vector<8x128xf32>
    %193 = vector.extract_strided_slice %178 {offsets = [0, 384], sizes = [8, 128], strides = [1, 1]} : vector<8x512xf32> to vector<8x128xf32>
    %194 = arith.negf %193 : vector<8x128xf32>
    %195 = math.exp %194 : vector<8x128xf32>
    %cst_46 = arith.constant 1.000000e+00 : f32
    %196 = vector.broadcast %cst_46 : f32 to vector<8x128xf32>
    %197 = arith.addf %196, %195 : vector<8x128xf32>
    %198 = arith.divf %196, %197 : vector<8x128xf32>
    %199 = arith.mulf %190, %169 : vector<8x128xf32>
    %200 = arith.mulf %184, %192 : vector<8x128xf32>
    %201 = arith.addf %199, %200 : vector<8x128xf32>
    %202 = math.tanh %201 : vector<8x128xf32>
    %203 = arith.mulf %198, %202 : vector<8x128xf32>
    %204 = arith.truncf %203 : vector<8x128xf32> to vector<8x128xbf16>
    %c6_i32 = arith.constant 6 : i32
    %c8_i32_47 = arith.constant 8 : i32
    %205 = arith.muli %c6_i32, %c8_i32_47 : i32
    %206 = tpu.assume_multiple %205, 8 : i32
    %207 = arith.index_cast %206 : i32 to index
    %c0_48 = arith.constant 0 : index
    %208 = vector.load %arg4[%207, %c0_48] : memref<64x512xf32, #tpu.memory_space<vmem>>, vector<8x512xf32>
    %cst_49 = arith.constant dense<0.000000e+00> : vector<8x512xf32>
    %209 = tpu.matmul %204, %1, %cst_49 {dimension_numbers = #tpu.dot_dimension_numbers<[1], [0], [0], [1], [0, 0, 1, 1], [], []>} : vector<8x128xbf16>, vector<128x512xbf16>, vector<8x512xf32> -> vector<8x512xf32>
    %210 = arith.addf %208, %209 : vector<8x512xf32>
    %211 = vector.extract_strided_slice %210 {offsets = [0, 0], sizes = [8, 128], strides = [1, 1]} : vector<8x512xf32> to vector<8x128xf32>
    %212 = arith.negf %211 : vector<8x128xf32>
    %213 = math.exp %212 : vector<8x128xf32>
    %cst_50 = arith.constant 1.000000e+00 : f32
    %214 = vector.broadcast %cst_50 : f32 to vector<8x128xf32>
    %215 = arith.addf %214, %213 : vector<8x128xf32>
    %216 = arith.divf %214, %215 : vector<8x128xf32>
    %217 = vector.extract_strided_slice %210 {offsets = [0, 128], sizes = [8, 128], strides = [1, 1]} : vector<8x512xf32> to vector<8x128xf32>
    %218 = arith.negf %217 : vector<8x128xf32>
    %219 = math.exp %218 : vector<8x128xf32>
    %cst_51 = arith.constant 1.000000e+00 : f32
    %220 = vector.broadcast %cst_51 : f32 to vector<8x128xf32>
    %221 = arith.addf %220, %219 : vector<8x128xf32>
    %222 = arith.divf %220, %221 : vector<8x128xf32>
    %223 = vector.extract_strided_slice %210 {offsets = [0, 256], sizes = [8, 128], strides = [1, 1]} : vector<8x512xf32> to vector<8x128xf32>
    %224 = math.tanh %223 : vector<8x128xf32>
    %225 = vector.extract_strided_slice %210 {offsets = [0, 384], sizes = [8, 128], strides = [1, 1]} : vector<8x512xf32> to vector<8x128xf32>
    %226 = arith.negf %225 : vector<8x128xf32>
    %227 = math.exp %226 : vector<8x128xf32>
    %cst_52 = arith.constant 1.000000e+00 : f32
    %228 = vector.broadcast %cst_52 : f32 to vector<8x128xf32>
    %229 = arith.addf %228, %227 : vector<8x128xf32>
    %230 = arith.divf %228, %229 : vector<8x128xf32>
    %231 = arith.mulf %222, %201 : vector<8x128xf32>
    %232 = arith.mulf %216, %224 : vector<8x128xf32>
    %233 = arith.addf %231, %232 : vector<8x128xf32>
    %234 = math.tanh %233 : vector<8x128xf32>
    %235 = arith.mulf %230, %234 : vector<8x128xf32>
    %236 = arith.truncf %235 : vector<8x128xf32> to vector<8x128xbf16>
    %c7_i32 = arith.constant 7 : i32
    %c8_i32_53 = arith.constant 8 : i32
    %237 = arith.muli %c7_i32, %c8_i32_53 : i32
    %238 = tpu.assume_multiple %237, 8 : i32
    %239 = arith.index_cast %238 : i32 to index
    %c0_54 = arith.constant 0 : index
    %240 = vector.load %arg4[%239, %c0_54] : memref<64x512xf32, #tpu.memory_space<vmem>>, vector<8x512xf32>
    %cst_55 = arith.constant dense<0.000000e+00> : vector<8x512xf32>
    %241 = tpu.matmul %236, %1, %cst_55 {dimension_numbers = #tpu.dot_dimension_numbers<[1], [0], [0], [1], [0, 0, 1, 1], [], []>} : vector<8x128xbf16>, vector<128x512xbf16>, vector<8x512xf32> -> vector<8x512xf32>
    %242 = arith.addf %240, %241 : vector<8x512xf32>
    %243 = vector.extract_strided_slice %242 {offsets = [0, 0], sizes = [8, 128], strides = [1, 1]} : vector<8x512xf32> to vector<8x128xf32>
    %244 = arith.negf %243 : vector<8x128xf32>
    %245 = math.exp %244 : vector<8x128xf32>
    %cst_56 = arith.constant 1.000000e+00 : f32
    %246 = vector.broadcast %cst_56 : f32 to vector<8x128xf32>
    %247 = arith.addf %246, %245 : vector<8x128xf32>
    %248 = arith.divf %246, %247 : vector<8x128xf32>
    %249 = vector.extract_strided_slice %242 {offsets = [0, 128], sizes = [8, 128], strides = [1, 1]} : vector<8x512xf32> to vector<8x128xf32>
    %250 = arith.negf %249 : vector<8x128xf32>
    %251 = math.exp %250 : vector<8x128xf32>
    %cst_57 = arith.constant 1.000000e+00 : f32
    %252 = vector.broadcast %cst_57 : f32 to vector<8x128xf32>
    %253 = arith.addf %252, %251 : vector<8x128xf32>
    %254 = arith.divf %252, %253 : vector<8x128xf32>
    %255 = vector.extract_strided_slice %242 {offsets = [0, 256], sizes = [8, 128], strides = [1, 1]} : vector<8x512xf32> to vector<8x128xf32>
    %256 = math.tanh %255 : vector<8x128xf32>
    %257 = vector.extract_strided_slice %242 {offsets = [0, 384], sizes = [8, 128], strides = [1, 1]} : vector<8x512xf32> to vector<8x128xf32>
    %258 = arith.negf %257 : vector<8x128xf32>
    %259 = math.exp %258 : vector<8x128xf32>
    %cst_58 = arith.constant 1.000000e+00 : f32
    %260 = vector.broadcast %cst_58 : f32 to vector<8x128xf32>
    %261 = arith.addf %260, %259 : vector<8x128xf32>
    %262 = arith.divf %260, %261 : vector<8x128xf32>
    %263 = arith.mulf %254, %233 : vector<8x128xf32>
    %264 = arith.mulf %248, %256 : vector<8x128xf32>
    %265 = arith.addf %263, %264 : vector<8x128xf32>
    %266 = math.tanh %265 : vector<8x128xf32>
    %267 = arith.mulf %262, %266 : vector<8x128xf32>
    %268 = arith.truncf %267 : vector<8x128xf32> to vector<8x128xbf16>
    %c8_i32_59 = arith.constant 8 : i32
    %cst_60 = arith.constant dense<0.000000e+00> : vector<8x512xf32>
    %269 = tpu.matmul %268, %2, %cst_60 {dimension_numbers = #tpu.dot_dimension_numbers<[1], [0], [0], [1], [0, 0, 1, 1], [], []>} : vector<8x128xbf16>, vector<128x512xbf16>, vector<8x512xf32> -> vector<8x512xf32>
    %270 = vector.broadcast %4 : vector<1x512xf32> to vector<8x512xf32>
    %271 = arith.addf %269, %270 : vector<8x512xf32>
    %c0_61 = arith.constant 0 : index
    %c0_62 = arith.constant 0 : index
    %272 = vector.load %arg3[%c0_61, %c0_62] : memref<8x512xf32, #tpu.memory_space<vmem>>, vector<8x512xf32>
    tpu.vector_store %arg3[%c0_61, %c0_62], %271 {strides = array<i32>} : memref<8x512xf32, #tpu.memory_space<vmem>>, vector<8x512xf32>,
    return
  }
}

</mosaic_0001>

<llo_original>
// kernel: tpu_custom_call.1
$region0: #{tpu_custom_call.1}
  #allocation0 [shape = 'u32[]', space=smem, size = 0x4, offset = 0x4, fixed_abs, tag = 'smem constant byte address 0x4 - core index']
  #allocation1 [shape = 'u32[144,128]{1,0:T(1,128)}', space=vmem, size = 0x12000, scoped, tag = 'internal scratch']
  #allocation2 [shape = 'f32[64,512]{1,0:T(8,128)}', space=vmem, size = 0x20000, scoped, tag = 'scratch operand']
  %s0 = inlined_call_operand.vmem [shape: f32[64,32], index: 0, kind: input, shape index: {}]
  %s1 = inlined_call_operand.hbm [shape: bf16[288,512], index: 1, kind: input, shape index: {}]
  %s2 = inlined_call_operand.vmem [shape: f32[2,512], index: 2, kind: input, shape index: {}]
  %s3 = inlined_call_operand.hbm [shape: f32[8,512], index: 3, kind: output, shape index: {}]
  %s4 = sld [smem:[#allocation0]]
  $region26: #{tpu_custom_call.1} parent=0
    _
  %s6 = ssub.s32 1, %s4
  %s7 = scalar_select 0, %s6, %s4
  $region1: #{tpu_custom_call.1} parent=0
    #allocation3 [shape = 'u8[294912]{0}', space=vmem, size = 0x48000, scoped, tag = 'input window, operand 1, single buffered']
    #allocation4 [shape = 's32[1]{0}', space=sflag, size = 0x4, scoped, tag = 'scoped memory for tpu_custom_call.1']
    #allocation5 [shape = 's32[1]{0}', space=sflag, size = 0x4, scoped, tag = 'scoped memory for tpu_custom_call.1']
    #allocation6 [shape = 'u8[16384]{0}', space=vmem, size = 0x4000, scoped, tag = 'output window, operand 0, single buffered']
    %8 = vsyncpa [#allocation4], 0
    %9 = vsyncpa [#allocation5], 0
    // Predicated region
    $region2: #{tpu_custom_call.1} parent=1 // pred_check
      _
    $region3: #{tpu_custom_call.1} parent=1 // pred_check_branch
      %11 = sbr.rel (0) target = $region5
    $region4: #{tpu_custom_call.1} parent=1 // pred_region
      _
    $region5: #{tpu_custom_call.1} parent=1 // pred_fallthru
      _
    // Predicated region
    $region6: #{tpu_custom_call.1} parent=1 // pred_check
      _
    $region7: #{tpu_custom_call.1} parent=1 // pred_check_branch
      %13 = sbr.rel (0) target = $region9
    $region8: #{tpu_custom_call.1} parent=1 // pred_region
      %s15 = ssub.s32 9216, 9216
      %16 = vsyncadd [#allocation4], %s15
      %s17 = sshll.u32 [#allocation3], 4
      %s18 = int_to_ptr.vmem [resolvable:$true] %s17
      %23 = dma.hbm_to_vmem [thread:$0]  %s1, 9216, %s18, [#allocation4], 256, 256, 16
    $region9: #{tpu_custom_call.1} parent=1 // pred_fallthru
      _
    // Predicated region
    $region10: #{tpu_custom_call.1} parent=1 // pred_check
      _
    $region11: #{tpu_custom_call.1} parent=1 // pred_check_branch
      %25 = sbr.rel (0) target = $region13
    $region12: #{tpu_custom_call.1} parent=1 // pred_region
      _
    $region13: #{tpu_custom_call.1} parent=1 // pred_fallthru
      _
    // Predicated region
    $region14: #{tpu_custom_call.1} parent=1 // pred_check
      _
    $region15: #{tpu_custom_call.1} parent=1 // pred_check_branch
      %27 = sbr.rel (0) target = $region17
    $region16: #{tpu_custom_call.1} parent=1 // pred_region
      %28 = dma.done [#allocation4], 9216
    $region17: #{tpu_custom_call.1} parent=1 // pred_fallthru
      _
    %v30 = vld [vmem:[#allocation3] sm:$0xff]
    %v31 = vld [vmem:[#allocation3 + $0x8] sm:$0xff]
    %v32 = vld [vmem:[#allocation3 + $0x10] sm:$0xff]
    %v33 = vld [vmem:[#allocation3 + $0x18] sm:$0xff]
    %v34 = vld [vmem:[#allocation3 + $0x20] sm:$0xff]
    %v35 = vld [vmem:[#allocation3 + $0x28] sm:$0xff]
    %v36 = vld [vmem:[#allocation3 + $0x30] sm:$0xff]
    %v37 = vld [vmem:[#allocation3 + $0x38] sm:$0xff]
    %v38 = vld [vmem:[#allocation3 + $0x40] sm:$0xff]
    %v39 = vld [vmem:[#allocation3 + $0x48] sm:$0xff]
    %v40 = vld [vmem:[#allocation3 + $0x50] sm:$0xff]
    %v41 = vld [vmem:[#allocation3 + $0x58] sm:$0xff]
    %v42 = vld [vmem:[#allocation3 + $0x60] sm:$0xff]
    %v43 = vld [vmem:[#allocation3 + $0x68] sm:$0xff]
    %v44 = vld [vmem:[#allocation3 + $0x70] sm:$0xff]
    %v45 = vld [vmem:[#allocation3 + $0x78] sm:$0xff]
    %v46 = vld [vmem:[#allocation3 + $0x80] sm:$0xff]
    %v47 = vld [vmem:[#allocation3 + $0x88] sm:$0xff]
    %v48 = vld [vmem:[#allocation3 + $0x90] sm:$0xff]
    %v49 = vld [vmem:[#allocation3 + $0x98] sm:$0xff]
    %v50 = vld [vmem:[#allocation3 + $0xa0] sm:$0xff]
    %v51 = vld [vmem:[#allocation3 + $0xa8] sm:$0xff]
    %v52 = vld [vmem:[#allocation3 + $0xb0] sm:$0xff]
    %v53 = vld [vmem:[#allocation3 + $0xb8] sm:$0xff]
    %v54 = vld [vmem:[#allocation3 + $0xc0] sm:$0xff]
    %v55 = vld [vmem:[#allocation3 + $0xc8] sm:$0xff]
    %v56 = vld [vmem:[#allocation3 + $0xd0] sm:$0xff]
    %v57 = vld [vmem:[#allocation3 + $0xd8] sm:$0xff]
    %v58 = vld [vmem:[#allocation3 + $0xe0] sm:$0xff]
    %v59 = vld [vmem:[#allocation3 + $0xe8] sm:$0xff]
    %v60 = vld [vmem:[#allocation3 + $0xf0] sm:$0xff]
    %v61 = vld [vmem:[#allocation3 + $0xf8] sm:$0xff]
    %v62 = vld [vmem:[#allocation3 + $0x100] sm:$0xff]
    %v63 = vld [vmem:[#allocation3 + $0x108] sm:$0xff]
    %v64 = vld [vmem:[#allocation3 + $0x110] sm:$0xff]
    %v65 = vld [vmem:[#allocation3 + $0x118] sm:$0xff]
    %v66 = vld [vmem:[#allocation3 + $0x120] sm:$0xff]
    %v67 = vld [vmem:[#allocation3 + $0x128] sm:$0xff]
    %v68 = vld [vmem:[#allocation3 + $0x130] sm:$0xff]
    %v69 = vld [vmem:[#allocation3 + $0x138] sm:$0xff]
    %v70 = vld [vmem:[#allocation3 + $0x140] sm:$0xff]
    %v71 = vld [vmem:[#allocation3 + $0x148] sm:$0xff]
    %v72 = vld [vmem:[#allocation3 + $0x150] sm:$0xff]
    %v73 = vld [vmem:[#allocation3 + $0x158] sm:$0xff]
    %v74 = vld [vmem:[#allocation3 + $0x160] sm:$0xff]
    %v75 = vld [vmem:[#allocation3 + $0x168] sm:$0xff]
    %v76 = vld [vmem:[#allocation3 + $0x170] sm:$0xff]
    %v77 = vld [vmem:[#allocation3 + $0x178] sm:$0xff]
    %v78 = vld [vmem:[#allocation3 + $0x180] sm:$0xff]
    %v79 = vld [vmem:[#allocation3 + $0x188] sm:$0xff]
    %v80 = vld [vmem:[#allocation3 + $0x190] sm:$0xff]
    %v81 = vld [vmem:[#allocation3 + $0x198] sm:$0xff]
    %v82 = vld [vmem:[#allocation3 + $0x1a0] sm:$0xff]
    %v83 = vld [vmem:[#allocation3 + $0x1a8] sm:$0xff]
    %v84 = vld [vmem:[#allocation3 + $0x1b0] sm:$0xff]
    %v85 = vld [vmem:[#allocation3 + $0x1b8] sm:$0xff]
    %v86 = vld [vmem:[#allocation3 + $0x1c0] sm:$0xff]
    %v87 = vld [vmem:[#allocation3 + $0x1c8] sm:$0xff]
    %v88 = vld [vmem:[#allocation3 + $0x1d0] sm:$0xff]
    %v89 = vld [vmem:[#allocation3 + $0x1d8] sm:$0xff]
    %v90 = vld [vmem:[#allocation3 + $0x1e0] sm:$0xff]
    %v91 = vld [vmem:[#allocation3 + $0x1e8] sm:$0xff]
    %v92 = vld [vmem:[#allocation3 + $0x1f0] sm:$0xff]
    %v93 = vld [vmem:[#allocation3 + $0x1f8] sm:$0xff]
    %v94 = vld [vmem:[#allocation3 + $0x200] sm:$0xff]
    %v95 = vld [vmem:[#allocation3 + $0x208] sm:$0xff]
    %v96 = vld [vmem:[#allocation3 + $0x210] sm:$0xff]
    %v97 = vld [vmem:[#allocation3 + $0x218] sm:$0xff]
    %v98 = vld [vmem:[#allocation3 + $0x220] sm:$0xff]
    %v99 = vld [vmem:[#allocation3 + $0x228] sm:$0xff]
    %v100 = vld [vmem:[#allocation3 + $0x230] sm:$0xff]
    %v101 = vld [vmem:[#allocation3 + $0x238] sm:$0xff]
    %v102 = vld [vmem:[%s2] ss:$2 sm:$0xf]
    %s103 = scalar_lea.vmem %s2, 1
    %v104 = vld [vmem:[%s103] ss:$2 sm:$0xf]
    %v105 = vld [vmem:[%s0] sm:$0xff]
    %v106 = vld [vmem:[%s0 + $0x8] sm:$0xff]
    %v107 = vld [vmem:[%s0 + $0x10] sm:$0xff]
    %v108 = vld [vmem:[%s0 + $0x18] sm:$0xff]
    %v109 = vld [vmem:[%s0 + $0x20] sm:$0xff]
    %v110 = vld [vmem:[%s0 + $0x28] sm:$0xff]
    %v111 = vld [vmem:[%s0 + $0x30] sm:$0xff]
    %v112 = vld [vmem:[%s0 + $0x38] sm:$0xff]
    %v113 = vpack.c.bf16 %v106, %v105
    %v114 = vpack.c.bf16 %v108, %v107
    %v115 = vpack.c.bf16 %v110, %v109
    %v116 = vpack.c.bf16 %v112, %v111
    %v118 = vlaneseq
    %v119 = vshrl.u32 %v118, 7
    %v120 = vsub.s32 0, %v119
    %v121 = vrot.slane %v102, %v120
    %v122 = vlaneseq
    %v123 = vshrl.u32 %v122, 7
    %v124 = vsub.s32 1, %v123
    %v125 = vrot.slane %v102, %v124
    %v126 = vlaneseq
    %v127 = vshrl.u32 %v126, 7
    %v128 = vsub.s32 2, %v127
    %v129 = vrot.slane %v102, %v128
    %v130 = vlaneseq
    %v131 = vshrl.u32 %v130, 7
    %v132 = vsub.s32 3, %v131
    %v133 = vrot.slane %v102, %v132
    %v146 = vunpack.c.l.b16 %v30
    %v147 = vunpack.c.h.b16 %v30
    %v148 = vunpack.c.l.b16 %v31
    %v149 = vunpack.c.h.b16 %v31
    %v150 = vunpack.c.l.b16 %v32
    %v151 = vunpack.c.h.b16 %v32
    %v152 = vunpack.c.l.b16 %v33
    %v153 = vunpack.c.h.b16 %v33
    %v154 = vunpack.c.l.b16 %v34
    %v155 = vunpack.c.h.b16 %v34
    %v156 = vunpack.c.l.b16 %v35
    %v157 = vunpack.c.h.b16 %v35
    %v158 = vunpack.c.l.b16 %v36
    %v159 = vunpack.c.h.b16 %v36
    %v160 = vunpack.c.l.b16 %v37
    %v161 = vunpack.c.h.b16 %v37
    %v162 = vpack.c.b16 %v150, %v146
    %v163 = vpack.c.b16 %v151, %v147
    %v164 = vpack.c.b16 %v152, %v148
    %v165 = vpack.c.b16 %v153, %v149
    %v166 = vpack.c.b16 %v158, %v154
    %v167 = vpack.c.b16 %v159, %v155
    %v168 = vpack.c.b16 %v160, %v156
    %v169 = vpack.c.b16 %v161, %v157
    %vm178 = vcmask 261120
    %v180 = vsel %vm178, %v113, 0
    %v183 = vsel %vm178, %v114, 0
    %v186 = vsel %vm178, %v115, 0
    %v189 = vsel %vm178, %v116, 0
    %191 = vmatprep.subr.bf16.mxu0 0
    %192 = vmatpush1.bf16.msra.mxu0 0
    %193 = vmatprep.subr.bf16.mxu0 0
    %194 = vmatpush1.bf16.msra.mxu0 0
    %195 = vmatprep.subr.bf16.mxu0 0
    %196 = vmatpush1.bf16.msra.mxu0 0
    %197 = vmatprep.subr.bf16.mxu0 0
    %198 = vmatpush1.bf16.msra.mxu0 0
    %199 = vmatprep.subr.bf16.mxu0 0
    %200 = vmatpush1.bf16.msra.mxu0 0
    %201 = vmatprep.subr.bf16.mxu0 0
    %202 = vmatpush1.bf16.msra.mxu0 0
    %203 = vmatprep.subr.bf16.mxu0 %v167
    %204 = vmatpush1.bf16.msra.mxu0 %v166
    %205 = vmatprep.subr.bf16.mxu0 %v163
    %206 = vmatpush1.bf16.msra.mxu0 %v162
    %207 = vmatprep.subr.bf16.mxu0 0
    %208 = vmatpush2.bf16.msra.mxu0 0
    %209 = vmatprep.subr.bf16.mxu0 0
    %210 = vmatpush2.bf16.msra.mxu0 0
    %211 = vmatprep.subr.bf16.mxu0 0
    %212 = vmatpush2.bf16.msra.mxu0 0
    %213 = vmatprep.subr.bf16.mxu0 0
    %214 = vmatpush2.bf16.msra.mxu0 0
    %215 = vmatprep.subr.bf16.mxu0 0
    %216 = vmatpush2.bf16.msra.mxu0 0
    %217 = vmatprep.subr.bf16.mxu0 0
    %218 = vmatpush2.bf16.msra.mxu0 0
    %219 = vmatprep.subr.bf16.mxu0 0
    %220 = vmatpush2.bf16.msra.mxu0 0
    %221 = vmatprep.subr.bf16.mxu0 0
    %222 = vmatpush2.bf16.msra.mxu0 0
    %223 = vmatprep.mubr.bf16.mxu0 0
    %224 = vmatmul.mubr.bf16.gmra.mxu0 %v180
    %v225 = vpop.f32.mrf.mxu0
    %v226 = vadd.f32 %v121, %v225
    %v227 = vpop.f32.mrf.mxu0
    %v228 = vadd.f32 %v125, %v227
    %v229 = vpop.f32.mrf.mxu0
    %v230 = vadd.f32 %v121, %v229
    %v231 = vpop.f32.mrf.mxu0
    %v232 = vadd.f32 %v125, %v231
    %233 = vmatprep.mubr.bf16.mxu0 0
    %234 = vmatmul.mubr.bf16.gmra.mxu0 %v183
    %v235 = vpop.f32.mrf.mxu0
    %v236 = vadd.f32 %v121, %v235
    %v237 = vpop.f32.mrf.mxu0
    %v238 = vadd.f32 %v125, %v237
    %v239 = vpop.f32.mrf.mxu0
    %v240 = vadd.f32 %v121, %v239
    %v241 = vpop.f32.mrf.mxu0
    %v242 = vadd.f32 %v125, %v241
    %243 = vmatprep.mubr.bf16.mxu0 0
    %244 = vmatmul.mubr.bf16.gmra.mxu0 %v186
    %v245 = vpop.f32.mrf.mxu0
    %v246 = vadd.f32 %v121, %v245
    %v247 = vpop.f32.mrf.mxu0
    %v248 = vadd.f32 %v125, %v247
    %v249 = vpop.f32.mrf.mxu0
    %v250 = vadd.f32 %v121, %v249
    %v251 = vpop.f32.mrf.mxu0
    %v252 = vadd.f32 %v125, %v251
    %253 = vmatprep.mubr.bf16.mxu0 0
    %254 = vmatmul.mubr.bf16.gmra.mxu0 %v189
    %v255 = vpop.f32.mrf.mxu0
    %v256 = vadd.f32 %v121, %v255
    %v257 = vpop.f32.mrf.mxu0
    %v258 = vadd.f32 %v125, %v257
    %v259 = vpop.f32.mrf.mxu0
    %v260 = vadd.f32 %v121, %v259
    %v261 = vpop.f32.mrf.mxu0
    %v262 = vadd.f32 %v125, %v261
    %263 = vdwg.mxu0
    %264 = vmatprep.subr.bf16.mxu0 0
    %265 = vmatpush1.bf16.msra.mxu0 0
    %266 = vmatprep.subr.bf16.mxu0 0
    %267 = vmatpush1.bf16.msra.mxu0 0
    %268 = vmatprep.subr.bf16.mxu0 0
    %269 = vmatpush1.bf16.msra.mxu0 0
    %270 = vmatprep.subr.bf16.mxu0 0
    %271 = vmatpush1.bf16.msra.mxu0 0
    %272 = vmatprep.subr.bf16.mxu0 0
    %273 = vmatpush1.bf16.msra.mxu0 0
    %274 = vmatprep.subr.bf16.mxu0 0
    %275 = vmatpush1.bf16.msra.mxu0 0
    %276 = vmatprep.subr.bf16.mxu0 %v169
    %277 = vmatpush1.bf16.msra.mxu0 %v168
    %278 = vmatprep.subr.bf16.mxu0 %v165
    %279 = vmatpush1.bf16.msra.mxu0 %v164
    %280 = vmatprep.subr.bf16.mxu0 0
    %281 = vmatpush2.bf16.msra.mxu0 0
    %282 = vmatprep.subr.bf16.mxu0 0
    %283 = vmatpush2.bf16.msra.mxu0 0
    %284 = vmatprep.subr.bf16.mxu0 0
    %285 = vmatpush2.bf16.msra.mxu0 0
    %286 = vmatprep.subr.bf16.mxu0 0
    %287 = vmatpush2.bf16.msra.mxu0 0
    %288 = vmatprep.subr.bf16.mxu0 0
    %289 = vmatpush2.bf16.msra.mxu0 0
    %290 = vmatprep.subr.bf16.mxu0 0
    %291 = vmatpush2.bf16.msra.mxu0 0
    %292 = vmatprep.subr.bf16.mxu0 0
    %293 = vmatpush2.bf16.msra.mxu0 0
    %294 = vmatprep.subr.bf16.mxu0 0
    %295 = vmatpush2.bf16.msra.mxu0 0
    %296 = vmatprep.mubr.bf16.mxu0 0
    %297 = vmatmul.mubr.bf16.gmra.mxu0 %v180
    %v298 = vpop.f32.mrf.mxu0
    %v299 = vadd.f32 %v129, %v298
    %v300 = vpop.f32.mrf.mxu0
    %v301 = vadd.f32 %v133, %v300
    %v302 = vpop.f32.mrf.mxu0
    %v303 = vadd.f32 %v129, %v302
    %v304 = vpop.f32.mrf.mxu0
    %v305 = vadd.f32 %v133, %v304
    %306 = vmatprep.mubr.bf16.mxu0 0
    %307 = vmatmul.mubr.bf16.gmra.mxu0 %v183
    %v308 = vpop.f32.mrf.mxu0
    %v309 = vadd.f32 %v129, %v308
    %v310 = vpop.f32.mrf.mxu0
    %v311 = vadd.f32 %v133, %v310
    %v312 = vpop.f32.mrf.mxu0
    %v313 = vadd.f32 %v129, %v312
    %v314 = vpop.f32.mrf.mxu0
    %v315 = vadd.f32 %v133, %v314
    %316 = vmatprep.mubr.bf16.mxu0 0
    %317 = vmatmul.mubr.bf16.gmra.mxu0 %v186
    %v318 = vpop.f32.mrf.mxu0
    %v319 = vadd.f32 %v129, %v318
    %v320 = vpop.f32.mrf.mxu0
    %v321 = vadd.f32 %v133, %v320
    %v322 = vpop.f32.mrf.mxu0
    %v323 = vadd.f32 %v129, %v322
    %v324 = vpop.f32.mrf.mxu0
    %v325 = vadd.f32 %v133, %v324
    %326 = vmatprep.mubr.bf16.mxu0 0
    %327 = vmatmul.mubr.bf16.gmra.mxu0 %v189
    %v328 = vpop.f32.mrf.mxu0
    %v329 = vadd.f32 %v129, %v328
    %v330 = vpop.f32.mrf.mxu0
    %v331 = vadd.f32 %v133, %v330
    %v332 = vpop.f32.mrf.mxu0
    %v333 = vadd.f32 %v129, %v332
    %v334 = vpop.f32.mrf.mxu0
    %v335 = vadd.f32 %v133, %v334
    %336 = vdwg.mxu0
    %337 = vst [vmem:[#allocation2] sm:$0xff] %v226
    %338 = vst [vmem:[#allocation2 + $0x8] sm:$0xff] %v228
    %339 = vst [vmem:[#allocation2 + $0x10] sm:$0xff] %v299
    %340 = vst [vmem:[#allocation2 + $0x18] sm:$0xff] %v301
    %341 = vst [vmem:[#allocation2 + $0x20] sm:$0xff] %v230
    %342 = vst [vmem:[#allocation2 + $0x28] sm:$0xff] %v232
    %343 = vst [vmem:[#allocation2 + $0x30] sm:$0xff] %v303
    %344 = vst [vmem:[#allocation2 + $0x38] sm:$0xff] %v305
    %345 = vst [vmem:[#allocation2 + $0x40] sm:$0xff] %v236
    %346 = vst [vmem:[#allocation2 + $0x48] sm:$0xff] %v238
    %347 = vst [vmem:[#allocation2 + $0x50] sm:$0xff] %v309
    %348 = vst [vmem:[#allocation2 + $0x58] sm:$0xff] %v311
    %349 = vst [vmem:[#allocation2 + $0x60] sm:$0xff] %v240
    %350 = vst [vmem:[#allocation2 + $0x68] sm:$0xff] %v242
    %351 = vst [vmem:[#allocation2 + $0x70] sm:$0xff] %v313
    %352 = vst [vmem:[#allocation2 + $0x78] sm:$0xff] %v315
    %353 = vst [vmem:[#allocation2 + $0x80] sm:$0xff] %v246
    %354 = vst [vmem:[#allocation2 + $0x88] sm:$0xff] %v248
    %355 = vst [vmem:[#allocation2 + $0x90] sm:$0xff] %v319
    %356 = vst [vmem:[#allocation2 + $0x98] sm:$0xff] %v321
    %357 = vst [vmem:[#allocation2 + $0xa0] sm:$0xff] %v250
    %358 = vst [vmem:[#allocation2 + $0xa8] sm:$0xff] %v252
    %359 = vst [vmem:[#allocation2 + $0xb0] sm:$0xff] %v323
    %360 = vst [vmem:[#allocation2 + $0xb8] sm:$0xff] %v325
    %361 = vst [vmem:[#allocation2 + $0xc0] sm:$0xff] %v256
    %362 = vst [vmem:[#allocation2 + $0xc8] sm:$0xff] %v258
    %363 = vst [vmem:[#allocation2 + $0xd0] sm:$0xff] %v329
    %364 = vst [vmem:[#allocation2 + $0xd8] sm:$0xff] %v331
    %365 = vst [vmem:[#allocation2 + $0xe0] sm:$0xff] %v260
    %366 = vst [vmem:[#allocation2 + $0xe8] sm:$0xff] %v262
    %367 = vst [vmem:[#allocation2 + $0xf0] sm:$0xff] %v333
    %368 = vst [vmem:[#allocation2 + $0xf8] sm:$0xff] %v335
    %s369 = smul.u32 0, 4
    %s370 = smul.addr %s369, 8
    %s371 = scalar_lea.vmem [#allocation2], %s370
    %v372 = vld [vmem:[%s371] sm:$0xff]
    %v373 = vld [vmem:[%s371 + $0x8] sm:$0xff]
    %v374 = vld [vmem:[%s371 + $0x10] sm:$0xff]
    %v375 = vld [vmem:[%s371 + $0x18] sm:$0xff]
    %v408 = vunpack.c.l.b16 %v38
    %v409 = vunpack.c.h.b16 %v38
    %v410 = vunpack.c.l.b16 %v39
    %v411 = vunpack.c.h.b16 %v39
    %v412 = vunpack.c.l.b16 %v40
    %v413 = vunpack.c.h.b16 %v40
    %v414 = vunpack.c.l.b16 %v41
    %v415 = vunpack.c.h.b16 %v41
    %v416 = vunpack.c.l.b16 %v42
    %v417 = vunpack.c.h.b16 %v42
    %v418 = vunpack.c.l.b16 %v43
    %v419 = vunpack.c.h.b16 %v43
    %v420 = vunpack.c.l.b16 %v44
    %v421 = vunpack.c.h.b16 %v44
    %v422 = vunpack.c.l.b16 %v45
    %v423 = vunpack.c.h.b16 %v45
    %v424 = vunpack.c.l.b16 %v46
    %v425 = vunpack.c.h.b16 %v46
    %v426 = vunpack.c.l.b16 %v47
    %v427 = vunpack.c.h.b16 %v47
    %v428 = vunpack.c.l.b16 %v48
    %v429 = vunpack.c.h.b16 %v48
    %v430 = vunpack.c.l.b16 %v49
    %v431 = vunpack.c.h.b16 %v49
    %v432 = vunpack.c.l.b16 %v50
    %v433 = vunpack.c.h.b16 %v50
    %v434 = vunpack.c.l.b16 %v51
    %v435 = vunpack.c.h.b16 %v51
    %v436 = vunpack.c.l.b16 %v52
    %v437 = vunpack.c.h.b16 %v52
    %v438 = vunpack.c.l.b16 %v53
    %v439 = vunpack.c.h.b16 %v53
    %v440 = vunpack.c.l.b16 %v54
    %v441 = vunpack.c.h.b16 %v54
    %v442 = vunpack.c.l.b16 %v55
    %v443 = vunpack.c.h.b16 %v55
    %v444 = vunpack.c.l.b16 %v56
    %v445 = vunpack.c.h.b16 %v56
    %v446 = vunpack.c.l.b16 %v57
    %v447 = vunpack.c.h.b16 %v57
    %v448 = vunpack.c.l.b16 %v58
    %v449 = vunpack.c.h.b16 %v58
    %v450 = vunpack.c.l.b16 %v59
    %v451 = vunpack.c.h.b16 %v59
    %v452 = vunpack.c.l.b16 %v60
    %v453 = vunpack.c.h.b16 %v60
    %v454 = vunpack.c.l.b16 %v61
    %v455 = vunpack.c.h.b16 %v61
    %v456 = vunpack.c.l.b16 %v62
    %v457 = vunpack.c.h.b16 %v62
    %v458 = vunpack.c.l.b16 %v63
    %v459 = vunpack.c.h.b16 %v63
    %v460 = vunpack.c.l.b16 %v64
    %v461 = vunpack.c.h.b16 %v64
    %v462 = vunpack.c.l.b16 %v65
    %v463 = vunpack.c.h.b16 %v65
    %v464 = vunpack.c.l.b16 %v66
    %v465 = vunpack.c.h.b16 %v66
    %v466 = vunpack.c.l.b16 %v67
    %v467 = vunpack.c.h.b16 %v67
    %v468 = vunpack.c.l.b16 %v68
    %v469 = vunpack.c.h.b16 %v68
    %v470 = vunpack.c.l.b16 %v69
    %v471 = vunpack.c.h.b16 %v69
    %v472 = vpack.c.b16 %v412, %v408
    %v473 = vpack.c.b16 %v413, %v409
    %v474 = vpack.c.b16 %v414, %v410
    %v475 = vpack.c.b16 %v415, %v411
    %v476 = vpack.c.b16 %v420, %v416
    %v477 = vpack.c.b16 %v421, %v417
    %v478 = vpack.c.b16 %v422, %v418
    %v479 = vpack.c.b16 %v423, %v419
    %v480 = vpack.c.b16 %v428, %v424
    %v481 = vpack.c.b16 %v429, %v425
    %v482 = vpack.c.b16 %v430, %v426
    %v483 = vpack.c.b16 %v431, %v427
    %v484 = vpack.c.b16 %v436, %v432
    %v485 = vpack.c.b16 %v437, %v433
    %v486 = vpack.c.b16 %v438, %v434
    %v487 = vpack.c.b16 %v439, %v435
    %v488 = vpack.c.b16 %v444, %v440
    %v489 = vpack.c.b16 %v445, %v441
    %v490 = vpack.c.b16 %v446, %v442
    %v491 = vpack.c.b16 %v447, %v443
    %v492 = vpack.c.b16 %v452, %v448
    %v493 = vpack.c.b16 %v453, %v449
    %v494 = vpack.c.b16 %v454, %v450
    %v495 = vpack.c.b16 %v455, %v451
    %v496 = vpack.c.b16 %v460, %v456
    %v497 = vpack.c.b16 %v461, %v457
    %v498 = vpack.c.b16 %v462, %v458
    %v499 = vpack.c.b16 %v463, %v459
    %v500 = vpack.c.b16 %v468, %v464
    %v501 = vpack.c.b16 %v469, %v465
    %v502 = vpack.c.b16 %v470, %v466
    %v503 = vpack.c.b16 %v471, %v467
    %536 = vmatprep.subr.bf16.mxu0 %v501
    %537 = vmatpush1.bf16.msra.mxu0 %v500
    %538 = vmatprep.subr.bf16.mxu0 %v497
    %539 = vmatpush1.bf16.msra.mxu0 %v496
    %540 = vmatprep.subr.bf16.mxu0 %v493
    %541 = vmatpush1.bf16.msra.mxu0 %v492
    %542 = vmatprep.subr.bf16.mxu0 %v489
    %543 = vmatpush1.bf16.msra.mxu0 %v488
    %544 = vmatprep.subr.bf16.mxu0 %v485
    %545 = vmatpush1.bf16.msra.mxu0 %v484
    %546 = vmatprep.subr.bf16.mxu0 %v481
    %547 = vmatpush1.bf16.msra.mxu0 %v480
    %548 = vmatprep.subr.bf16.mxu0 %v477
    %549 = vmatpush1.bf16.msra.mxu0 %v476
    %550 = vmatprep.subr.bf16.mxu0 %v473
    %551 = vmatpush1.bf16.msra.mxu0 %v472
    %552 = vmatprep.subr.bf16.mxu0 0
    %553 = vmatpush2.bf16.msra.mxu0 0
    %554 = vmatprep.subr.bf16.mxu0 0
    %555 = vmatpush2.bf16.msra.mxu0 0
    %556 = vmatprep.subr.bf16.mxu0 0
    %557 = vmatpush2.bf16.msra.mxu0 0
    %558 = vmatprep.subr.bf16.mxu0 0
    %559 = vmatpush2.bf16.msra.mxu0 0
    %560 = vmatprep.subr.bf16.mxu0 0
    %561 = vmatpush2.bf16.msra.mxu0 0
    %562 = vmatprep.subr.bf16.mxu0 0
    %563 = vmatpush2.bf16.msra.mxu0 0
    %564 = vmatprep.subr.bf16.mxu0 0
    %565 = vmatpush2.bf16.msra.mxu0 0
    %566 = vmatprep.subr.bf16.mxu0 0
    %567 = vmatpush2.bf16.msra.mxu0 0
    %568 = vmatprep.mubr.bf16.mxu0 0
    %569 = vmatmul.mubr.bf16.gmra.mxu0 0
    %v570 = vpop.f32.mrf.mxu0
    %v571 = vadd.f32 0.0, %v570
    %v572 = vpop.f32.mrf.mxu0
    %v573 = vadd.f32 0.0, %v572
    %v574 = vpop.f32.mrf.mxu0
    %v575 = vpop.f32.mrf.mxu0
    %576 = vdwg.mxu0
    %577 = vmatprep.subr.bf16.mxu0 %v503
    %578 = vmatpush1.bf16.msra.mxu0 %v502
    %579 = vmatprep.subr.bf16.mxu0 %v499
    %580 = vmatpush1.bf16.msra.mxu0 %v498
    %581 = vmatprep.subr.bf16.mxu0 %v495
    %582 = vmatpush1.bf16.msra.mxu0 %v494
    %583 = vmatprep.subr.bf16.mxu0 %v491
    %584 = vmatpush1.bf16.msra.mxu0 %v490
    %585 = vmatprep.subr.bf16.mxu0 %v487
    %586 = vmatpush1.bf16.msra.mxu0 %v486
    %587 = vmatprep.subr.bf16.mxu0 %v483
    %588 = vmatpush1.bf16.msra.mxu0 %v482
    %589 = vmatprep.subr.bf16.mxu0 %v479
    %590 = vmatpush1.bf16.msra.mxu0 %v478
    %591 = vmatprep.subr.bf16.mxu0 %v475
    %592 = vmatpush1.bf16.msra.mxu0 %v474
    %593 = vmatprep.subr.bf16.mxu0 0
    %594 = vmatpush2.bf16.msra.mxu0 0
    %595 = vmatprep.subr.bf16.mxu0 0
    %596 = vmatpush2.bf16.msra.mxu0 0
    %597 = vmatprep.subr.bf16.mxu0 0
    %598 = vmatpush2.bf16.msra.mxu0 0
    %599 = vmatprep.subr.bf16.mxu0 0
    %600 = vmatpush2.bf16.msra.mxu0 0
    %601 = vmatprep.subr.bf16.mxu0 0
    %602 = vmatpush2.bf16.msra.mxu0 0
    %603 = vmatprep.subr.bf16.mxu0 0
    %604 = vmatpush2.bf16.msra.mxu0 0
    %605 = vmatprep.subr.bf16.mxu0 0
    %606 = vmatpush2.bf16.msra.mxu0 0
    %607 = vmatprep.subr.bf16.mxu0 0
    %608 = vmatpush2.bf16.msra.mxu0 0
    %609 = vmatprep.mubr.bf16.mxu0 0
    %610 = vmatmul.mubr.bf16.gmra.mxu0 0
    %v611 = vpop.f32.mrf.mxu0
    %v612 = vadd.f32 0.0, %v611
    %v613 = vpop.f32.mrf.mxu0
    %v614 = vadd.f32 0.0, %v613
    %v615 = vpop.f32.mrf.mxu0
    %v616 = vpop.f32.mrf.mxu0
    %617 = vdwg.mxu0
    %v618 = vadd.f32 %v372, %v571
    %v619 = vadd.f32 %v373, %v573
    %v620 = vadd.f32 %v374, %v612
    %v621 = vadd.f32 %v375, %v614
    %v622 = vxor.u32 %v618, 2147483648
    %v623 = vmul.f32 %v622, 1.442695
    %v624 = vpow.pop %v623
    %v625 = vadd.f32 %v624, 1.0
    %v626 = vrcp.pop %v625
    %v627 = vmul.f32 1.0, %v626
    %v628 = vxor.u32 %v619, 2147483648
    %v629 = vmul.f32 %v628, 1.442695
    %v630 = vpow.pop %v629
    %v631 = vadd.f32 %v630, 1.0
    %v632 = vrcp.pop %v631
    %v633 = vmul.f32 1.0, %v632
    %v634 = vtanh.pop %v620
    %v635 = vxor.u32 %v621, 2147483648
    %v636 = vmul.f32 %v635, 1.442695
    %v637 = vpow.pop %v636
    %v638 = vadd.f32 %v637, 1.0
    %v639 = vrcp.pop %v638
    %v640 = vmul.f32 1.0, %v639
    %v641 = vmul.f32 %v633, 0.0
    %v642 = vmul.f32 %v627, %v634
    %v643 = vadd.f32 %v641, %v642
    %v644 = vtanh.pop %v643
    %v645 = vmul.f32 %v640, %v644
    %v646 = vpack.c.bf16 %v645, %v645
    %s647 = smul.u32 1, 4
    %s648 = smul.addr %s647, 8
    %s649 = scalar_lea.vmem [#allocation2], %s648
    %v650 = vld [vmem:[%s649] sm:$0xff]
    %v651 = vld [vmem:[%s649 + $0x8] sm:$0xff]
    %v652 = vld [vmem:[%s649 + $0x10] sm:$0xff]
    %v653 = vld [vmem:[%s649 + $0x18] sm:$0xff]
    %654 = vmatprep.subr.bf16.mxu0 %v501
    %655 = vmatpush1.bf16.msra.mxu0 %v500
    %656 = vmatprep.subr.bf16.mxu0 %v497
    %657 = vmatpush1.bf16.msra.mxu0 %v496
    %658 = vmatprep.subr.bf16.mxu0 %v493
    %659 = vmatpush1.bf16.msra.mxu0 %v492
    %660 = vmatprep.subr.bf16.mxu0 %v489
    %661 = vmatpush1.bf16.msra.mxu0 %v488
    %662 = vmatprep.subr.bf16.mxu0 %v485
    %663 = vmatpush1.bf16.msra.mxu0 %v484
    %664 = vmatprep.subr.bf16.mxu0 %v481
    %665 = vmatpush1.bf16.msra.mxu0 %v480
    %666 = vmatprep.subr.bf16.mxu0 %v477
    %667 = vmatpush1.bf16.msra.mxu0 %v476
    %668 = vmatprep.subr.bf16.mxu0 %v473
    %669 = vmatpush1.bf16.msra.mxu0 %v472
    %670 = vmatprep.subr.bf16.mxu0 0
    %671 = vmatpush2.bf16.msra.mxu0 0
    %672 = vmatprep.subr.bf16.mxu0 0
    %673 = vmatpush2.bf16.msra.mxu0 0
    %674 = vmatprep.subr.bf16.mxu0 0
    %675 = vmatpush2.bf16.msra.mxu0 0
    %676 = vmatprep.subr.bf16.mxu0 0
    %677 = vmatpush2.bf16.msra.mxu0 0
    %678 = vmatprep.subr.bf16.mxu0 0
    %679 = vmatpush2.bf16.msra.mxu0 0
    %680 = vmatprep.subr.bf16.mxu0 0
    %681 = vmatpush2.bf16.msra.mxu0 0
    %682 = vmatprep.subr.bf16.mxu0 0
    %683 = vmatpush2.bf16.msra.mxu0 0
    %684 = vmatprep.subr.bf16.mxu0 0
    %685 = vmatpush2.bf16.msra.mxu0 0
    %686 = vmatprep.mubr.bf16.mxu0 0
    %687 = vmatmul.mubr.bf16.gmra.mxu0 %v646
    %v688 = vpop.f32.mrf.mxu0
    %v689 = vadd.f32 0.0, %v688
    %v690 = vpop.f32.mrf.mxu0
    %v691 = vadd.f32 0.0, %v690
    %v692 = vpop.f32.mrf.mxu0
    %v693 = vpop.f32.mrf.mxu0
    %694 = vdwg.mxu0
    %695 = vmatprep.subr.bf16.mxu0 %v503
    %696 = vmatpush1.bf16.msra.mxu0 %v502
    %697 = vmatprep.subr.bf16.mxu0 %v499
    %698 = vmatpush1.bf16.msra.mxu0 %v498
    %699 = vmatprep.subr.bf16.mxu0 %v495
    %700 = vmatpush1.bf16.msra.mxu0 %v494
    %701 = vmatprep.subr.bf16.mxu0 %v491
    %702 = vmatpush1.bf16.msra.mxu0 %v490
    %703 = vmatprep.subr.bf16.mxu0 %v487
    %704 = vmatpush1.bf16.msra.mxu0 %v486
    %705 = vmatprep.subr.bf16.mxu0 %v483
    %706 = vmatpush1.bf16.msra.mxu0 %v482
    %707 = vmatprep.subr.bf16.mxu0 %v479
    %708 = vmatpush1.bf16.msra.mxu0 %v478
    %709 = vmatprep.subr.bf16.mxu0 %v475
    %710 = vmatpush1.bf16.msra.mxu0 %v474
    %711 = vmatprep.subr.bf16.mxu0 0
    %712 = vmatpush2.bf16.msra.mxu0 0
    %713 = vmatprep.subr.bf16.mxu0 0
    %714 = vmatpush2.bf16.msra.mxu0 0
    %715 = vmatprep.subr.bf16.mxu0 0
    %716 = vmatpush2.bf16.msra.mxu0 0
    %717 = vmatprep.subr.bf16.mxu0 0
    %718 = vmatpush2.bf16.msra.mxu0 0
    %719 = vmatprep.subr.bf16.mxu0 0
    %720 = vmatpush2.bf16.msra.mxu0 0
    %721 = vmatprep.subr.bf16.mxu0 0
    %722 = vmatpush2.bf16.msra.mxu0 0
    %723 = vmatprep.subr.bf16.mxu0 0
    %724 = vmatpush2.bf16.msra.mxu0 0
    %725 = vmatprep.subr.bf16.mxu0 0
    %726 = vmatpush2.bf16.msra.mxu0 0
    %727 = vmatprep.mubr.bf16.mxu0 0
    %728 = vmatmul.mubr.bf16.gmra.mxu0 %v646
    %v729 = vpop.f32.mrf.mxu0
    %v730 = vadd.f32 0.0, %v729
    %v731 = vpop.f32.mrf.mxu0
    %v732 = vadd.f32 0.0, %v731
    %v733 = vpop.f32.mrf.mxu0
    %v734 = vpop.f32.mrf.mxu0
    %735 = vdwg.mxu0
    %v736 = vadd.f32 %v650, %v689
    %v737 = vadd.f32 %v651, %v691
    %v738 = vadd.f32 %v652, %v730
    %v739 = vadd.f32 %v653, %v732
    %v740 = vxor.u32 %v736, 2147483648
    %v741 = vmul.f32 %v740, 1.442695
    %v742 = vpow.pop %v741
    %v743 = vadd.f32 %v742, 1.0
    %v744 = vrcp.pop %v743
    %v745 = vmul.f32 1.0, %v744
    %v746 = vxor.u32 %v737, 2147483648
    %v747 = vmul.f32 %v746, 1.442695
    %v748 = vpow.pop %v747
    %v749 = vadd.f32 %v748, 1.0
    %v750 = vrcp.pop %v749
    %v751 = vmul.f32 1.0, %v750
    %v752 = vtanh.pop %v738
    %v753 = vxor.u32 %v739, 2147483648
    %v754 = vmul.f32 %v753, 1.442695
    %v755 = vpow.pop %v754
    %v756 = vadd.f32 %v755, 1.0
    %v757 = vrcp.pop %v756
    %v758 = vmul.f32 1.0, %v757
    %v759 = vmul.f32 %v751, %v643
    %v760 = vmul.f32 %v745, %v752
    %v761 = vadd.f32 %v759, %v760
    %v762 = vtanh.pop %v761
    %v763 = vmul.f32 %v758, %v762
    %v764 = vpack.c.bf16 %v763, %v763
    %s765 = smul.u32 2, 4
    %s766 = smul.addr %s765, 8
    %s767 = scalar_lea.vmem [#allocation2], %s766
    %v768 = vld [vmem:[%s767] sm:$0xff]
    %v769 = vld [vmem:[%s767 + $0x8] sm:$0xff]
    %v770 = vld [vmem:[%s767 + $0x10] sm:$0xff]
    %v771 = vld [vmem:[%s767 + $0x18] sm:$0xff]
    %772 = vmatprep.subr.bf16.mxu0 %v501
    %773 = vmatpush1.bf16.msra.mxu0 %v500
    %774 = vmatprep.subr.bf16.mxu0 %v497
    %775 = vmatpush1.bf16.msra.mxu0 %v496
    %776 = vmatprep.subr.bf16.mxu0 %v493
    %777 = vmatpush1.bf16.msra.mxu0 %v492
    %778 = vmatprep.subr.bf16.mxu0 %v489
    %779 = vmatpush1.bf16.msra.mxu0 %v488
    %780 = vmatprep.subr.bf16.mxu0 %v485
    %781 = vmatpush1.bf16.msra.mxu0 %v484
    %782 = vmatprep.subr.bf16.mxu0 %v481
    %783 = vmatpush1.bf16.msra.mxu0 %v480
    %784 = vmatprep.subr.bf16.mxu0 %v477
    %785 = vmatpush1.bf16.msra.mxu0 %v476
    %786 = vmatprep.subr.bf16.mxu0 %v473
    %787 = vmatpush1.bf16.msra.mxu0 %v472
    %788 = vmatprep.subr.bf16.mxu0 0
    %789 = vmatpush2.bf16.msra.mxu0 0
    %790 = vmatprep.subr.bf16.mxu0 0
    %791 = vmatpush2.bf16.msra.mxu0 0
    %792 = vmatprep.subr.bf16.mxu0 0
    %793 = vmatpush2.bf16.msra.mxu0 0
    %794 = vmatprep.subr.bf16.mxu0 0
    %795 = vmatpush2.bf16.msra.mxu0 0
    %796 = vmatprep.subr.bf16.mxu0 0
    %797 = vmatpush2.bf16.msra.mxu0 0
    %798 = vmatprep.subr.bf16.mxu0 0
    %799 = vmatpush2.bf16.msra.mxu0 0
    %800 = vmatprep.subr.bf16.mxu0 0
    %801 = vmatpush2.bf16.msra.mxu0 0
    %802 = vmatprep.subr.bf16.mxu0 0
    %803 = vmatpush2.bf16.msra.mxu0 0
    %804 = vmatprep.mubr.bf16.mxu0 0
    %805 = vmatmul.mubr.bf16.gmra.mxu0 %v764
    %v806 = vpop.f32.mrf.mxu0
    %v807 = vadd.f32 0.0, %v806
    %v808 = vpop.f32.mrf.mxu0
    %v809 = vadd.f32 0.0, %v808
    %v810 = vpop.f32.mrf.mxu0
    %v811 = vpop.f32.mrf.mxu0
    %812 = vdwg.mxu0
    %813 = vmatprep.subr.bf16.mxu0 %v503
    %814 = vmatpush1.bf16.msra.mxu0 %v502
    %815 = vmatprep.subr.bf16.mxu0 %v499
    %816 = vmatpush1.bf16.msra.mxu0 %v498
    %817 = vmatprep.subr.bf16.mxu0 %v495
    %818 = vmatpush1.bf16.msra.mxu0 %v494
    %819 = vmatprep.subr.bf16.mxu0 %v491
    %820 = vmatpush1.bf16.msra.mxu0 %v490
    %821 = vmatprep.subr.bf16.mxu0 %v487
    %822 = vmatpush1.bf16.msra.mxu0 %v486
    %823 = vmatprep.subr.bf16.mxu0 %v483
    %824 = vmatpush1.bf16.msra.mxu0 %v482
    %825 = vmatprep.subr.bf16.mxu0 %v479
    %826 = vmatpush1.bf16.msra.mxu0 %v478
    %827 = vmatprep.subr.bf16.mxu0 %v475
    %828 = vmatpush1.bf16.msra.mxu0 %v474
    %829 = vmatprep.subr.bf16.mxu0 0
    %830 = vmatpush2.bf16.msra.mxu0 0
    %831 = vmatprep.subr.bf16.mxu0 0
    %832 = vmatpush2.bf16.msra.mxu0 0
    %833 = vmatprep.subr.bf16.mxu0 0
    %834 = vmatpush2.bf16.msra.mxu0 0
    %835 = vmatprep.subr.bf16.mxu0 0
    %836 = vmatpush2.bf16.msra.mxu0 0
    %837 = vmatprep.subr.bf16.mxu0 0
    %838 = vmatpush2.bf16.msra.mxu0 0
    %839 = vmatprep.subr.bf16.mxu0 0
    %840 = vmatpush2.bf16.msra.mxu0 0
    %841 = vmatprep.subr.bf16.mxu0 0
    %842 = vmatpush2.bf16.msra.mxu0 0
    %843 = vmatprep.subr.bf16.mxu0 0
    %844 = vmatpush2.bf16.msra.mxu0 0
    %845 = vmatprep.mubr.bf16.mxu0 0
    %846 = vmatmul.mubr.bf16.gmra.mxu0 %v764
    %v847 = vpop.f32.mrf.mxu0
    %v848 = vadd.f32 0.0, %v847
    %v849 = vpop.f32.mrf.mxu0
    %v850 = vadd.f32 0.0, %v849
    %v851 = vpop.f32.mrf.mxu0
    %v852 = vpop.f32.mrf.mxu0
    %853 = vdwg.mxu0
    %v854 = vadd.f32 %v768, %v807
    %v855 = vadd.f32 %v769, %v809
    %v856 = vadd.f32 %v770, %v848
    %v857 = vadd.f32 %v771, %v850
    %v858 = vxor.u32 %v854, 2147483648
    %v859 = vmul.f32 %v858, 1.442695
    %v860 = vpow.pop %v859
    %v861 = vadd.f32 %v860, 1.0
    %v862 = vrcp.pop %v861
    %v863 = vmul.f32 1.0, %v862
    %v864 = vxor.u32 %v855, 2147483648
    %v865 = vmul.f32 %v864, 1.442695
    %v866 = vpow.pop %v865
    %v867 = vadd.f32 %v866, 1.0
    %v868 = vrcp.pop %v867
    %v869 = vmul.f32 1.0, %v868
    %v870 = vtanh.pop %v856
    %v871 = vxor.u32 %v857, 2147483648
    %v872 = vmul.f32 %v871, 1.442695
    %v873 = vpow.pop %v872
    %v874 = vadd.f32 %v873, 1.0
    %v875 = vrcp.pop %v874
    %v876 = vmul.f32 1.0, %v875
    %v877 = vmul.f32 %v869, %v761
    %v878 = vmul.f32 %v863, %v870
    %v879 = vadd.f32 %v877, %v878
    %v880 = vtanh.pop %v879
    %v881 = vmul.f32 %v876, %v880
    %v882 = vpack.c.bf16 %v881, %v881
    %s883 = smul.u32 3, 4
    %s884 = smul.addr %s883, 8
    %s885 = scalar_lea.vmem [#allocation2], %s884
    %v886 = vld [vmem:[%s885] sm:$0xff]
    %v887 = vld [vmem:[%s885 + $0x8] sm:$0xff]
    %v888 = vld [vmem:[%s885 + $0x10] sm:$0xff]
    %v889 = vld [vmem:[%s885 + $0x18] sm:$0xff]
    %890 = vmatprep.subr.bf16.mxu0 %v501
    %891 = vmatpush1.bf16.msra.mxu0 %v500
    %892 = vmatprep.subr.bf16.mxu0 %v497
    %893 = vmatpush1.bf16.msra.mxu0 %v496
    %894 = vmatprep.subr.bf16.mxu0 %v493
    %895 = vmatpush1.bf16.msra.mxu0 %v492
    %896 = vmatprep.subr.bf16.mxu0 %v489
    %897 = vmatpush1.bf16.msra.mxu0 %v488
    %898 = vmatprep.subr.bf16.mxu0 %v485
    %899 = vmatpush1.bf16.msra.mxu0 %v484
    %900 = vmatprep.subr.bf16.mxu0 %v481
    %901 = vmatpush1.bf16.msra.mxu0 %v480
    %902 = vmatprep.subr.bf16.mxu0 %v477
    %903 = vmatpush1.bf16.msra.mxu0 %v476
    %904 = vmatprep.subr.bf16.mxu0 %v473
    %905 = vmatpush1.bf16.msra.mxu0 %v472
    %906 = vmatprep.subr.bf16.mxu0 0
    %907 = vmatpush2.bf16.msra.mxu0 0
    %908 = vmatprep.subr.bf16.mxu0 0
    %909 = vmatpush2.bf16.msra.mxu0 0
    %910 = vmatprep.subr.bf16.mxu0 0
    %911 = vmatpush2.bf16.msra.mxu0 0
    %912 = vmatprep.subr.bf16.mxu0 0
    %913 = vmatpush2.bf16.msra.mxu0 0
    %914 = vmatprep.subr.bf16.mxu0 0
    %915 = vmatpush2.bf16.msra.mxu0 0
    %916 = vmatprep.subr.bf16.mxu0 0
    %917 = vmatpush2.bf16.msra.mxu0 0
    %918 = vmatprep.subr.bf16.mxu0 0
    %919 = vmatpush2.bf16.msra.mxu0 0
    %920 = vmatprep.subr.bf16.mxu0 0
    %921 = vmatpush2.bf16.msra.mxu0 0
    %922 = vmatprep.mubr.bf16.mxu0 0
    %923 = vmatmul.mubr.bf16.gmra.mxu0 %v882
    %v924 = vpop.f32.mrf.mxu0
    %v925 = vadd.f32 0.0, %v924
    %v926 = vpop.f32.mrf.mxu0
    %v927 = vadd.f32 0.0, %v926
    %v928 = vpop.f32.mrf.mxu0
    %v929 = vpop.f32.mrf.mxu0
    %930 = vdwg.mxu0
    %931 = vmatprep.subr.bf16.mxu0 %v503
    %932 = vmatpush1.bf16.msra.mxu0 %v502
    %933 = vmatprep.subr.bf16.mxu0 %v499
    %934 = vmatpush1.bf16.msra.mxu0 %v498
    %935 = vmatprep.subr.bf16.mxu0 %v495
    %936 = vmatpush1.bf16.msra.mxu0 %v494
    %937 = vmatprep.subr.bf16.mxu0 %v491
    %938 = vmatpush1.bf16.msra.mxu0 %v490
    %939 = vmatprep.subr.bf16.mxu0 %v487
    %940 = vmatpush1.bf16.msra.mxu0 %v486
    %941 = vmatprep.subr.bf16.mxu0 %v483
    %942 = vmatpush1.bf16.msra.mxu0 %v482
    %943 = vmatprep.subr.bf16.mxu0 %v479
    %944 = vmatpush1.bf16.msra.mxu0 %v478
    %945 = vmatprep.subr.bf16.mxu0 %v475
    %946 = vmatpush1.bf16.msra.mxu0 %v474
    %947 = vmatprep.subr.bf16.mxu0 0
    %948 = vmatpush2.bf16.msra.mxu0 0
    %949 = vmatprep.subr.bf16.mxu0 0
    %950 = vmatpush2.bf16.msra.mxu0 0
    %951 = vmatprep.subr.bf16.mxu0 0
    %952 = vmatpush2.bf16.msra.mxu0 0
    %953 = vmatprep.subr.bf16.mxu0 0
    %954 = vmatpush2.bf16.msra.mxu0 0
    %955 = vmatprep.subr.bf16.mxu0 0
    %956 = vmatpush2.bf16.msra.mxu0 0
    %957 = vmatprep.subr.bf16.mxu0 0
    %958 = vmatpush2.bf16.msra.mxu0 0
    %959 = vmatprep.subr.bf16.mxu0 0
    %960 = vmatpush2.bf16.msra.mxu0 0
    %961 = vmatprep.subr.bf16.mxu0 0
    %962 = vmatpush2.bf16.msra.mxu0 0
    %963 = vmatprep.mubr.bf16.mxu0 0
    %964 = vmatmul.mubr.bf16.gmra.mxu0 %v882
    %v965 = vpop.f32.mrf.mxu0
    %v966 = vadd.f32 0.0, %v965
    %v967 = vpop.f32.mrf.mxu0
    %v968 = vadd.f32 0.0, %v967
    %v969 = vpop.f32.mrf.mxu0
    %v970 = vpop.f32.mrf.mxu0
    %971 = vdwg.mxu0
    %v972 = vadd.f32 %v886, %v925
    %v973 = vadd.f32 %v887, %v927
    %v974 = vadd.f32 %v888, %v966
    %v975 = vadd.f32 %v889, %v968
    %v976 = vxor.u32 %v972, 2147483648
    %v977 = vmul.f32 %v976, 1.442695
    %v978 = vpow.pop %v977
    %v979 = vadd.f32 %v978, 1.0
    %v980 = vrcp.pop %v979
    %v981 = vmul.f32 1.0, %v980
    %v982 = vxor.u32 %v973, 2147483648
    %v983 = vmul.f32 %v982, 1.442695
    %v984 = vpow.pop %v983
    %v985 = vadd.f32 %v984, 1.0
    %v986 = vrcp.pop %v985
    %v987 = vmul.f32 1.0, %v986
    %v988 = vtanh.pop %v974
    %v989 = vxor.u32 %v975, 2147483648
    %v990 = vmul.f32 %v989, 1.442695
    %v991 = vpow.pop %v990
    %v992 = vadd.f32 %v991, 1.0
    %v993 = vrcp.pop %v992
    %v994 = vmul.f32 1.0, %v993
    %v995 = vmul.f32 %v987, %v879
    %v996 = vmul.f32 %v981, %v988
    %v997 = vadd.f32 %v995, %v996
    %v998 = vtanh.pop %v997
    %v999 = vmul.f32 %v994, %v998
    %v1000 = vpack.c.bf16 %v999, %v999
    %s1001 = smul.u32 4, 4
    %s1002 = smul.addr %s1001, 8
    %s1003 = scalar_lea.vmem [#allocation2], %s1002
    %v1004 = vld [vmem:[%s1003] sm:$0xff]
    %v1005 = vld [vmem:[%s1003 + $0x8] sm:$0xff]
    %v1006 = vld [vmem:[%s1003 + $0x10] sm:$0xff]
    %v1007 = vld [vmem:[%s1003 + $0x18] sm:$0xff]
    %1008 = vmatprep.subr.bf16.mxu0 %v501
    %1009 = vmatpush1.bf16.msra.mxu0 %v500
    %1010 = vmatprep.subr.bf16.mxu0 %v497
    %1011 = vmatpush1.bf16.msra.mxu0 %v496
    %1012 = vmatprep.subr.bf16.mxu0 %v493
    %1013 = vmatpush1.bf16.msra.mxu0 %v492
    %1014 = vmatprep.subr.bf16.mxu0 %v489
    %1015 = vmatpush1.bf16.msra.mxu0 %v488
    %1016 = vmatprep.subr.bf16.mxu0 %v485
    %1017 = vmatpush1.bf16.msra.mxu0 %v484
    %1018 = vmatprep.subr.bf16.mxu0 %v481
    %1019 = vmatpush1.bf16.msra.mxu0 %v480
    %1020 = vmatprep.subr.bf16.mxu0 %v477
    %1021 = vmatpush1.bf16.msra.mxu0 %v476
    %1022 = vmatprep.subr.bf16.mxu0 %v473
    %1023 = vmatpush1.bf16.msra.mxu0 %v472
    %1024 = vmatprep.subr.bf16.mxu0 0
    %1025 = vmatpush2.bf16.msra.mxu0 0
    %1026 = vmatprep.subr.bf16.mxu0 0
    %1027 = vmatpush2.bf16.msra.mxu0 0
    %1028 = vmatprep.subr.bf16.mxu0 0
    %1029 = vmatpush2.bf16.msra.mxu0 0
    %1030 = vmatprep.subr.bf16.mxu0 0
    %1031 = vmatpush2.bf16.msra.mxu0 0
    %1032 = vmatprep.subr.bf16.mxu0 0
    %1033 = vmatpush2.bf16.msra.mxu0 0
    %1034 = vmatprep.subr.bf16.mxu0 0
    %1035 = vmatpush2.bf16.msra.mxu0 0
    %1036 = vmatprep.subr.bf16.mxu0 0
    %1037 = vmatpush2.bf16.msra.mxu0 0
    %1038 = vmatprep.subr.bf16.mxu0 0
    %1039 = vmatpush2.bf16.msra.mxu0 0
    %1040 = vmatprep.mubr.bf16.mxu0 0
    %1041 = vmatmul.mubr.bf16.gmra.mxu0 %v1000
    %v1042 = vpop.f32.mrf.mxu0
    %v1043 = vadd.f32 0.0, %v1042
    %v1044 = vpop.f32.mrf.mxu0
    %v1045 = vadd.f32 0.0, %v1044
    %v1046 = vpop.f32.mrf.mxu0
    %v1047 = vpop.f32.mrf.mxu0
    %1048 = vdwg.mxu0
    %1049 = vmatprep.subr.bf16.mxu0 %v503
    %1050 = vmatpush1.bf16.msra.mxu0 %v502
    %1051 = vmatprep.subr.bf16.mxu0 %v499
    %1052 = vmatpush1.bf16.msra.mxu0 %v498
    %1053 = vmatprep.subr.bf16.mxu0 %v495
    %1054 = vmatpush1.bf16.msra.mxu0 %v494
    %1055 = vmatprep.subr.bf16.mxu0 %v491
    %1056 = vmatpush1.bf16.msra.mxu0 %v490
    %1057 = vmatprep.subr.bf16.mxu0 %v487
    %1058 = vmatpush1.bf16.msra.mxu0 %v486
    %1059 = vmatprep.subr.bf16.mxu0 %v483
    %1060 = vmatpush1.bf16.msra.mxu0 %v482
    %1061 = vmatprep.subr.bf16.mxu0 %v479
    %1062 = vmatpush1.bf16.msra.mxu0 %v478
    %1063 = vmatprep.subr.bf16.mxu0 %v475
    %1064 = vmatpush1.bf16.msra.mxu0 %v474
    %1065 = vmatprep.subr.bf16.mxu0 0
    %1066 = vmatpush2.bf16.msra.mxu0 0
    %1067 = vmatprep.subr.bf16.mxu0 0
    %1068 = vmatpush2.bf16.msra.mxu0 0
    %1069 = vmatprep.subr.bf16.mxu0 0
    %1070 = vmatpush2.bf16.msra.mxu0 0
    %1071 = vmatprep.subr.bf16.mxu0 0
    %1072 = vmatpush2.bf16.msra.mxu0 0
    %1073 = vmatprep.subr.bf16.mxu0 0
    %1074 = vmatpush2.bf16.msra.mxu0 0
    %1075 = vmatprep.subr.bf16.mxu0 0
    %1076 = vmatpush2.bf16.msra.mxu0 0
    %1077 = vmatprep.subr.bf16.mxu0 0
    %1078 = vmatpush2.bf16.msra.mxu0 0
    %1079 = vmatprep.subr.bf16.mxu0 0
    %1080 = vmatpush2.bf16.msra.mxu0 0
    %1081 = vmatprep.mubr.bf16.mxu0 0
    %1082 = vmatmul.mubr.bf16.gmra.mxu0 %v1000
    %v1083 = vpop.f32.mrf.mxu0
    %v1084 = vadd.f32 0.0, %v1083
    %v1085 = vpop.f32.mrf.mxu0
    %v1086 = vadd.f32 0.0, %v1085
    %v1087 = vpop.f32.mrf.mxu0
    %v1088 = vpop.f32.mrf.mxu0
    %1089 = vdwg.mxu0
    %v1090 = vadd.f32 %v1004, %v1043
    %v1091 = vadd.f32 %v1005, %v1045
    %v1092 = vadd.f32 %v1006, %v1084
    %v1093 = vadd.f32 %v1007, %v1086
    %v1094 = vxor.u32 %v1090, 2147483648
    %v1095 = vmul.f32 %v1094, 1.442695
    %v1096 = vpow.pop %v1095
    %v1097 = vadd.f32 %v1096, 1.0
    %v1098 = vrcp.pop %v1097
    %v1099 = vmul.f32 1.0, %v1098
    %v1100 = vxor.u32 %v1091, 2147483648
    %v1101 = vmul.f32 %v1100, 1.442695
    %v1102 = vpow.pop %v1101
    %v1103 = vadd.f32 %v1102, 1.0
    %v1104 = vrcp.pop %v1103
    %v1105 = vmul.f32 1.0, %v1104
    %v1106 = vtanh.pop %v1092
    %v1107 = vxor.u32 %v1093, 2147483648
    %v1108 = vmul.f32 %v1107, 1.442695
    %v1109 = vpow.pop %v1108
    %v1110 = vadd.f32 %v1109, 1.0
    %v1111 = vrcp.pop %v1110
    %v1112 = vmul.f32 1.0, %v1111
    %v1113 = vmul.f32 %v1105, %v997
    %v1114 = vmul.f32 %v1099, %v1106
    %v1115 = vadd.f32 %v1113, %v1114
    %v1116 = vtanh.pop %v1115
    %v1117 = vmul.f32 %v1112, %v1116
    %v1118 = vpack.c.bf16 %v1117, %v1117
    %s1119 = smul.u32 5, 4
    %s1120 = smul.addr %s1119, 8
    %s1121 = scalar_lea.vmem [#allocation2], %s1120
    %v1122 = vld [vmem:[%s1121] sm:$0xff]
    %v1123 = vld [vmem:[%s1121 + $0x8] sm:$0xff]
    %v1124 = vld [vmem:[%s1121 + $0x10] sm:$0xff]
    %v1125 = vld [vmem:[%s1121 + $0x18] sm:$0xff]
    %1126 = vmatprep.subr.bf16.mxu0 %v501
    %1127 = vmatpush1.bf16.msra.mxu0 %v500
    %1128 = vmatprep.subr.bf16.mxu0 %v497
    %1129 = vmatpush1.bf16.msra.mxu0 %v496
    %1130 = vmatprep.subr.bf16.mxu0 %v493
    %1131 = vmatpush1.bf16.msra.mxu0 %v492
    %1132 = vmatprep.subr.bf16.mxu0 %v489
    %1133 = vmatpush1.bf16.msra.mxu0 %v488
    %1134 = vmatprep.subr.bf16.mxu0 %v485
    %1135 = vmatpush1.bf16.msra.mxu0 %v484
    %1136 = vmatprep.subr.bf16.mxu0 %v481
    %1137 = vmatpush1.bf16.msra.mxu0 %v480
    %1138 = vmatprep.subr.bf16.mxu0 %v477
    %1139 = vmatpush1.bf16.msra.mxu0 %v476
    %1140 = vmatprep.subr.bf16.mxu0 %v473
    %1141 = vmatpush1.bf16.msra.mxu0 %v472
    %1142 = vmatprep.subr.bf16.mxu0 0
    %1143 = vmatpush2.bf16.msra.mxu0 0
    %1144 = vmatprep.subr.bf16.mxu0 0
    %1145 = vmatpush2.bf16.msra.mxu0 0
    %1146 = vmatprep.subr.bf16.mxu0 0
    %1147 = vmatpush2.bf16.msra.mxu0 0
    %1148 = vmatprep.subr.bf16.mxu0 0
    %1149 = vmatpush2.bf16.msra.mxu0 0
    %1150 = vmatprep.subr.bf16.mxu0 0
    %1151 = vmatpush2.bf16.msra.mxu0 0
    %1152 = vmatprep.subr.bf16.mxu0 0
    %1153 = vmatpush2.bf16.msra.mxu0 0
    %1154 = vmatprep.subr.bf16.mxu0 0
    %1155 = vmatpush2.bf16.msra.mxu0 0
    %1156 = vmatprep.subr.bf16.mxu0 0
    %1157 = vmatpush2.bf16.msra.mxu0 0
    %1158 = vmatprep.mubr.bf16.mxu0 0
    %1159 = vmatmul.mubr.bf16.gmra.mxu0 %v1118
    %v1160 = vpop.f32.mrf.mxu0
    %v1161 = vadd.f32 0.0, %v1160
    %v1162 = vpop.f32.mrf.mxu0
    %v1163 = vadd.f32 0.0, %v1162
    %v1164 = vpop.f32.mrf.mxu0
    %v1165 = vpop.f32.mrf.mxu0
    %1166 = vdwg.mxu0
    %1167 = vmatprep.subr.bf16.mxu0 %v503
    %1168 = vmatpush1.bf16.msra.mxu0 %v502
    %1169 = vmatprep.subr.bf16.mxu0 %v499
    %1170 = vmatpush1.bf16.msra.mxu0 %v498
    %1171 = vmatprep.subr.bf16.mxu0 %v495
    %1172 = vmatpush1.bf16.msra.mxu0 %v494
    %1173 = vmatprep.subr.bf16.mxu0 %v491
    %1174 = vmatpush1.bf16.msra.mxu0 %v490
    %1175 = vmatprep.subr.bf16.mxu0 %v487
    %1176 = vmatpush1.bf16.msra.mxu0 %v486
    %1177 = vmatprep.subr.bf16.mxu0 %v483
    %1178 = vmatpush1.bf16.msra.mxu0 %v482
    %1179 = vmatprep.subr.bf16.mxu0 %v479
    %1180 = vmatpush1.bf16.msra.mxu0 %v478
    %1181 = vmatprep.subr.bf16.mxu0 %v475
    %1182 = vmatpush1.bf16.msra.mxu0 %v474
    %1183 = vmatprep.subr.bf16.mxu0 0
    %1184 = vmatpush2.bf16.msra.mxu0 0
    %1185 = vmatprep.subr.bf16.mxu0 0
    %1186 = vmatpush2.bf16.msra.mxu0 0
    %1187 = vmatprep.subr.bf16.mxu0 0
    %1188 = vmatpush2.bf16.msra.mxu0 0
    %1189 = vmatprep.subr.bf16.mxu0 0
    %1190 = vmatpush2.bf16.msra.mxu0 0
    %1191 = vmatprep.subr.bf16.mxu0 0
    %1192 = vmatpush2.bf16.msra.mxu0 0
    %1193 = vmatprep.subr.bf16.mxu0 0
    %1194 = vmatpush2.bf16.msra.mxu0 0
    %1195 = vmatprep.subr.bf16.mxu0 0
    %1196 = vmatpush2.bf16.msra.mxu0 0
    %1197 = vmatprep.subr.bf16.mxu0 0
    %1198 = vmatpush2.bf16.msra.mxu0 0
    %1199 = vmatprep.mubr.bf16.mxu0 0
    %1200 = vmatmul.mubr.bf16.gmra.mxu0 %v1118
    %v1201 = vpop.f32.mrf.mxu0
    %v1202 = vadd.f32 0.0, %v1201
    %v1203 = vpop.f32.mrf.mxu0
    %v1204 = vadd.f32 0.0, %v1203
    %v1205 = vpop.f32.mrf.mxu0
    %v1206 = vpop.f32.mrf.mxu0
    %1207 = vdwg.mxu0
    %v1208 = vadd.f32 %v1122, %v1161
    %v1209 = vadd.f32 %v1123, %v1163
    %v1210 = vadd.f32 %v1124, %v1202
    %v1211 = vadd.f32 %v1125, %v1204
    %v1212 = vxor.u32 %v1208, 2147483648
    %v1213 = vmul.f32 %v1212, 1.442695
    %v1214 = vpow.pop %v1213
    %v1215 = vadd.f32 %v1214, 1.0
    %v1216 = vrcp.pop %v1215
    %v1217 = vmul.f32 1.0, %v1216
    %v1218 = vxor.u32 %v1209, 2147483648
    %v1219 = vmul.f32 %v1218, 1.442695
    %v1220 = vpow.pop %v1219
    %v1221 = vadd.f32 %v1220, 1.0
    %v1222 = vrcp.pop %v1221
    %v1223 = vmul.f32 1.0, %v1222
    %v1224 = vtanh.pop %v1210
    %v1225 = vxor.u32 %v1211, 2147483648
    %v1226 = vmul.f32 %v1225, 1.442695
    %v1227 = vpow.pop %v1226
    %v1228 = vadd.f32 %v1227, 1.0
    %v1229 = vrcp.pop %v1228
    %v1230 = vmul.f32 1.0, %v1229
    %v1231 = vmul.f32 %v1223, %v1115
    %v1232 = vmul.f32 %v1217, %v1224
    %v1233 = vadd.f32 %v1231, %v1232
    %v1234 = vtanh.pop %v1233
    %v1235 = vmul.f32 %v1230, %v1234
    %v1236 = vpack.c.bf16 %v1235, %v1235
    %s1237 = smul.u32 6, 4
    %s1238 = smul.addr %s1237, 8
    %s1239 = scalar_lea.vmem [#allocation2], %s1238
    %v1240 = vld [vmem:[%s1239] sm:$0xff]
    %v1241 = vld [vmem:[%s1239 + $0x8] sm:$0xff]
    %v1242 = vld [vmem:[%s1239 + $0x10] sm:$0xff]
    %v1243 = vld [vmem:[%s1239 + $0x18] sm:$0xff]
    %1244 = vmatprep.subr.bf16.mxu0 %v501
    %1245 = vmatpush1.bf16.msra.mxu0 %v500
    %1246 = vmatprep.subr.bf16.mxu0 %v497
    %1247 = vmatpush1.bf16.msra.mxu0 %v496
    %1248 = vmatprep.subr.bf16.mxu0 %v493
    %1249 = vmatpush1.bf16.msra.mxu0 %v492
    %1250 = vmatprep.subr.bf16.mxu0 %v489
    %1251 = vmatpush1.bf16.msra.mxu0 %v488
    %1252 = vmatprep.subr.bf16.mxu0 %v485
    %1253 = vmatpush1.bf16.msra.mxu0 %v484
    %1254 = vmatprep.subr.bf16.mxu0 %v481
    %1255 = vmatpush1.bf16.msra.mxu0 %v480
    %1256 = vmatprep.subr.bf16.mxu0 %v477
    %1257 = vmatpush1.bf16.msra.mxu0 %v476
    %1258 = vmatprep.subr.bf16.mxu0 %v473
    %1259 = vmatpush1.bf16.msra.mxu0 %v472
    %1260 = vmatprep.subr.bf16.mxu0 0
    %1261 = vmatpush2.bf16.msra.mxu0 0
    %1262 = vmatprep.subr.bf16.mxu0 0
    %1263 = vmatpush2.bf16.msra.mxu0 0
    %1264 = vmatprep.subr.bf16.mxu0 0
    %1265 = vmatpush2.bf16.msra.mxu0 0
    %1266 = vmatprep.subr.bf16.mxu0 0
    %1267 = vmatpush2.bf16.msra.mxu0 0
    %1268 = vmatprep.subr.bf16.mxu0 0
    %1269 = vmatpush2.bf16.msra.mxu0 0
    %1270 = vmatprep.subr.bf16.mxu0 0
    %1271 = vmatpush2.bf16.msra.mxu0 0
    %1272 = vmatprep.subr.bf16.mxu0 0
    %1273 = vmatpush2.bf16.msra.mxu0 0
    %1274 = vmatprep.subr.bf16.mxu0 0
    %1275 = vmatpush2.bf16.msra.mxu0 0
    %1276 = vmatprep.mubr.bf16.mxu0 0
    %1277 = vmatmul.mubr.bf16.gmra.mxu0 %v1236
    %v1278 = vpop.f32.mrf.mxu0
    %v1279 = vadd.f32 0.0, %v1278
    %v1280 = vpop.f32.mrf.mxu0
    %v1281 = vadd.f32 0.0, %v1280
    %v1282 = vpop.f32.mrf.mxu0
    %v1283 = vpop.f32.mrf.mxu0
    %1284 = vdwg.mxu0
    %1285 = vmatprep.subr.bf16.mxu0 %v503
    %1286 = vmatpush1.bf16.msra.mxu0 %v502
    %1287 = vmatprep.subr.bf16.mxu0 %v499
    %1288 = vmatpush1.bf16.msra.mxu0 %v498
    %1289 = vmatprep.subr.bf16.mxu0 %v495
    %1290 = vmatpush1.bf16.msra.mxu0 %v494
    %1291 = vmatprep.subr.bf16.mxu0 %v491
    %1292 = vmatpush1.bf16.msra.mxu0 %v490
    %1293 = vmatprep.subr.bf16.mxu0 %v487
    %1294 = vmatpush1.bf16.msra.mxu0 %v486
    %1295 = vmatprep.subr.bf16.mxu0 %v483
    %1296 = vmatpush1.bf16.msra.mxu0 %v482
    %1297 = vmatprep.subr.bf16.mxu0 %v479
    %1298 = vmatpush1.bf16.msra.mxu0 %v478
    %1299 = vmatprep.subr.bf16.mxu0 %v475
    %1300 = vmatpush1.bf16.msra.mxu0 %v474
    %1301 = vmatprep.subr.bf16.mxu0 0
    %1302 = vmatpush2.bf16.msra.mxu0 0
    %1303 = vmatprep.subr.bf16.mxu0 0
    %1304 = vmatpush2.bf16.msra.mxu0 0
    %1305 = vmatprep.subr.bf16.mxu0 0
    %1306 = vmatpush2.bf16.msra.mxu0 0
    %1307 = vmatprep.subr.bf16.mxu0 0
    %1308 = vmatpush2.bf16.msra.mxu0 0
    %1309 = vmatprep.subr.bf16.mxu0 0
    %1310 = vmatpush2.bf16.msra.mxu0 0
    %1311 = vmatprep.subr.bf16.mxu0 0
    %1312 = vmatpush2.bf16.msra.mxu0 0
    %1313 = vmatprep.subr.bf16.mxu0 0
    %1314 = vmatpush2.bf16.msra.mxu0 0
    %1315 = vmatprep.subr.bf16.mxu0 0
    %1316 = vmatpush2.bf16.msra.mxu0 0
    %1317 = vmatprep.mubr.bf16.mxu0 0
    %1318 = vmatmul.mubr.bf16.gmra.mxu0 %v1236
    %v1319 = vpop.f32.mrf.mxu0
    %v1320 = vadd.f32 0.0, %v1319
    %v1321 = vpop.f32.mrf.mxu0
    %v1322 = vadd.f32 0.0, %v1321
    %v1323 = vpop.f32.mrf.mxu0
    %v1324 = vpop.f32.mrf.mxu0
    %1325 = vdwg.mxu0
    %v1326 = vadd.f32 %v1240, %v1279
    %v1327 = vadd.f32 %v1241, %v1281
    %v1328 = vadd.f32 %v1242, %v1320
    %v1329 = vadd.f32 %v1243, %v1322
    %v1330 = vxor.u32 %v1326, 2147483648
    %v1331 = vmul.f32 %v1330, 1.442695
    %v1332 = vpow.pop %v1331
    %v1333 = vadd.f32 %v1332, 1.0
    %v1334 = vrcp.pop %v1333
    %v1335 = vmul.f32 1.0, %v1334
    %v1336 = vxor.u32 %v1327, 2147483648
    %v1337 = vmul.f32 %v1336, 1.442695
    %v1338 = vpow.pop %v1337
    %v1339 = vadd.f32 %v1338, 1.0
    %v1340 = vrcp.pop %v1339
    %v1341 = vmul.f32 1.0, %v1340
    %v1342 = vtanh.pop %v1328
    %v1343 = vxor.u32 %v1329, 2147483648
    %v1344 = vmul.f32 %v1343, 1.442695
    %v1345 = vpow.pop %v1344
    %v1346 = vadd.f32 %v1345, 1.0
    %v1347 = vrcp.pop %v1346
    %v1348 = vmul.f32 1.0, %v1347
    %v1349 = vmul.f32 %v1341, %v1233
    %v1350 = vmul.f32 %v1335, %v1342
    %v1351 = vadd.f32 %v1349, %v1350
    %v1352 = vtanh.pop %v1351
    %v1353 = vmul.f32 %v1348, %v1352
    %v1354 = vpack.c.bf16 %v1353, %v1353
    %s1355 = smul.u32 7, 4
    %s1356 = smul.addr %s1355, 8
    %s1357 = scalar_lea.vmem [#allocation2], %s1356
    %v1358 = vld [vmem:[%s1357] sm:$0xff]
    %v1359 = vld [vmem:[%s1357 + $0x8] sm:$0xff]
    %v1360 = vld [vmem:[%s1357 + $0x10] sm:$0xff]
    %v1361 = vld [vmem:[%s1357 + $0x18] sm:$0xff]
    %1362 = vmatprep.subr.bf16.mxu0 %v501
    %1363 = vmatpush1.bf16.msra.mxu0 %v500
    %1364 = vmatprep.subr.bf16.mxu0 %v497
    %1365 = vmatpush1.bf16.msra.mxu0 %v496
    %1366 = vmatprep.subr.bf16.mxu0 %v493
    %1367 = vmatpush1.bf16.msra.mxu0 %v492
    %1368 = vmatprep.subr.bf16.mxu0 %v489
    %1369 = vmatpush1.bf16.msra.mxu0 %v488
    %1370 = vmatprep.subr.bf16.mxu0 %v485
    %1371 = vmatpush1.bf16.msra.mxu0 %v484
    %1372 = vmatprep.subr.bf16.mxu0 %v481
    %1373 = vmatpush1.bf16.msra.mxu0 %v480
    %1374 = vmatprep.subr.bf16.mxu0 %v477
    %1375 = vmatpush1.bf16.msra.mxu0 %v476
    %1376 = vmatprep.subr.bf16.mxu0 %v473
    %1377 = vmatpush1.bf16.msra.mxu0 %v472
    %1378 = vmatprep.subr.bf16.mxu0 0
    %1379 = vmatpush2.bf16.msra.mxu0 0
    %1380 = vmatprep.subr.bf16.mxu0 0
    %1381 = vmatpush2.bf16.msra.mxu0 0
    %1382 = vmatprep.subr.bf16.mxu0 0
    %1383 = vmatpush2.bf16.msra.mxu0 0
    %1384 = vmatprep.subr.bf16.mxu0 0
    %1385 = vmatpush2.bf16.msra.mxu0 0
    %1386 = vmatprep.subr.bf16.mxu0 0
    %1387 = vmatpush2.bf16.msra.mxu0 0
    %1388 = vmatprep.subr.bf16.mxu0 0
    %1389 = vmatpush2.bf16.msra.mxu0 0
    %1390 = vmatprep.subr.bf16.mxu0 0
    %1391 = vmatpush2.bf16.msra.mxu0 0
    %1392 = vmatprep.subr.bf16.mxu0 0
    %1393 = vmatpush2.bf16.msra.mxu0 0
    %1394 = vmatprep.mubr.bf16.mxu0 0
    %1395 = vmatmul.mubr.bf16.gmra.mxu0 %v1354
    %v1396 = vpop.f32.mrf.mxu0
    %v1397 = vadd.f32 0.0, %v1396
    %v1398 = vpop.f32.mrf.mxu0
    %v1399 = vadd.f32 0.0, %v1398
    %v1400 = vpop.f32.mrf.mxu0
    %v1401 = vpop.f32.mrf.mxu0
    %1402 = vdwg.mxu0
    %1403 = vmatprep.subr.bf16.mxu0 %v503
    %1404 = vmatpush1.bf16.msra.mxu0 %v502
    %1405 = vmatprep.subr.bf16.mxu0 %v499
    %1406 = vmatpush1.bf16.msra.mxu0 %v498
    %1407 = vmatprep.subr.bf16.mxu0 %v495
    %1408 = vmatpush1.bf16.msra.mxu0 %v494
    %1409 = vmatprep.subr.bf16.mxu0 %v491
    %1410 = vmatpush1.bf16.msra.mxu0 %v490
    %1411 = vmatprep.subr.bf16.mxu0 %v487
    %1412 = vmatpush1.bf16.msra.mxu0 %v486
    %1413 = vmatprep.subr.bf16.mxu0 %v483
    %1414 = vmatpush1.bf16.msra.mxu0 %v482
    %1415 = vmatprep.subr.bf16.mxu0 %v479
    %1416 = vmatpush1.bf16.msra.mxu0 %v478
    %1417 = vmatprep.subr.bf16.mxu0 %v475
    %1418 = vmatpush1.bf16.msra.mxu0 %v474
    %1419 = vmatprep.subr.bf16.mxu0 0
    %1420 = vmatpush2.bf16.msra.mxu0 0
    %1421 = vmatprep.subr.bf16.mxu0 0
    %1422 = vmatpush2.bf16.msra.mxu0 0
    %1423 = vmatprep.subr.bf16.mxu0 0
    %1424 = vmatpush2.bf16.msra.mxu0 0
    %1425 = vmatprep.subr.bf16.mxu0 0
    %1426 = vmatpush2.bf16.msra.mxu0 0
    %1427 = vmatprep.subr.bf16.mxu0 0
    %1428 = vmatpush2.bf16.msra.mxu0 0
    %1429 = vmatprep.subr.bf16.mxu0 0
    %1430 = vmatpush2.bf16.msra.mxu0 0
    %1431 = vmatprep.subr.bf16.mxu0 0
    %1432 = vmatpush2.bf16.msra.mxu0 0
    %1433 = vmatprep.subr.bf16.mxu0 0
    %1434 = vmatpush2.bf16.msra.mxu0 0
    %1435 = vmatprep.mubr.bf16.mxu0 0
    %1436 = vmatmul.mubr.bf16.gmra.mxu0 %v1354
    %v1437 = vpop.f32.mrf.mxu0
    %v1438 = vadd.f32 0.0, %v1437
    %v1439 = vpop.f32.mrf.mxu0
    %v1440 = vadd.f32 0.0, %v1439
    %v1441 = vpop.f32.mrf.mxu0
    %v1442 = vpop.f32.mrf.mxu0
    %1443 = vdwg.mxu0
    %v1444 = vadd.f32 %v1358, %v1397
    %v1445 = vadd.f32 %v1359, %v1399
    %v1446 = vadd.f32 %v1360, %v1438
    %v1447 = vadd.f32 %v1361, %v1440
    %v1448 = vxor.u32 %v1444, 2147483648
    %v1449 = vmul.f32 %v1448, 1.442695
    %v1450 = vpow.pop %v1449
    %v1451 = vadd.f32 %v1450, 1.0
    %v1452 = vrcp.pop %v1451
    %v1453 = vmul.f32 1.0, %v1452
    %v1454 = vxor.u32 %v1445, 2147483648
    %v1455 = vmul.f32 %v1454, 1.442695
    %v1456 = vpow.pop %v1455
    %v1457 = vadd.f32 %v1456, 1.0
    %v1458 = vrcp.pop %v1457
    %v1459 = vmul.f32 1.0, %v1458
    %v1460 = vtanh.pop %v1446
    %v1461 = vxor.u32 %v1447, 2147483648
    %v1462 = vmul.f32 %v1461, 1.442695
    %v1463 = vpow.pop %v1462
    %v1464 = vadd.f32 %v1463, 1.0
    %v1465 = vrcp.pop %v1464
    %v1466 = vmul.f32 1.0, %v1465
    %v1467 = vmul.f32 %v1459, %v1351
    %v1468 = vmul.f32 %v1453, %v1460
    %v1469 = vadd.f32 %v1467, %v1468
    %v1470 = vtanh.pop %v1469
    %v1471 = vmul.f32 %v1466, %v1470
    %v1472 = vpack.c.bf16 %v1471, %v1471
    %v1474 = vlaneseq
    %v1475 = vshrl.u32 %v1474, 7
    %v1476 = vsub.s32 0, %v1475
    %v1477 = vrot.slane %v104, %v1476
    %v1478 = vlaneseq
    %v1479 = vshrl.u32 %v1478, 7
    %v1480 = vsub.s32 1, %v1479
    %v1481 = vrot.slane %v104, %v1480
    %v1482 = vlaneseq
    %v1483 = vshrl.u32 %v1482, 7
    %v1484 = vsub.s32 2, %v1483
    %v1485 = vrot.slane %v104, %v1484
    %v1486 = vlaneseq
    %v1487 = vshrl.u32 %v1486, 7
    %v1488 = vsub.s32 3, %v1487
    %v1489 = vrot.slane %v104, %v1488
    %v1526 = vunpack.c.l.b16 %v70
    %v1527 = vunpack.c.h.b16 %v70
    %v1528 = vunpack.c.l.b16 %v71
    %v1529 = vunpack.c.h.b16 %v71
    %v1530 = vunpack.c.l.b16 %v72
    %v1531 = vunpack.c.h.b16 %v72
    %v1532 = vunpack.c.l.b16 %v73
    %v1533 = vunpack.c.h.b16 %v73
    %v1534 = vunpack.c.l.b16 %v74
    %v1535 = vunpack.c.h.b16 %v74
    %v1536 = vunpack.c.l.b16 %v75
    %v1537 = vunpack.c.h.b16 %v75
    %v1538 = vunpack.c.l.b16 %v76
    %v1539 = vunpack.c.h.b16 %v76
    %v1540 = vunpack.c.l.b16 %v77
    %v1541 = vunpack.c.h.b16 %v77
    %v1542 = vunpack.c.l.b16 %v78
    %v1543 = vunpack.c.h.b16 %v78
    %v1544 = vunpack.c.l.b16 %v79
    %v1545 = vunpack.c.h.b16 %v79
    %v1546 = vunpack.c.l.b16 %v80
    %v1547 = vunpack.c.h.b16 %v80
    %v1548 = vunpack.c.l.b16 %v81
    %v1549 = vunpack.c.h.b16 %v81
    %v1550 = vunpack.c.l.b16 %v82
    %v1551 = vunpack.c.h.b16 %v82
    %v1552 = vunpack.c.l.b16 %v83
    %v1553 = vunpack.c.h.b16 %v83
    %v1554 = vunpack.c.l.b16 %v84
    %v1555 = vunpack.c.h.b16 %v84
    %v1556 = vunpack.c.l.b16 %v85
    %v1557 = vunpack.c.h.b16 %v85
    %v1558 = vunpack.c.l.b16 %v86
    %v1559 = vunpack.c.h.b16 %v86
    %v1560 = vunpack.c.l.b16 %v87
    %v1561 = vunpack.c.h.b16 %v87
    %v1562 = vunpack.c.l.b16 %v88
    %v1563 = vunpack.c.h.b16 %v88
    %v1564 = vunpack.c.l.b16 %v89
    %v1565 = vunpack.c.h.b16 %v89
    %v1566 = vunpack.c.l.b16 %v90
    %v1567 = vunpack.c.h.b16 %v90
    %v1568 = vunpack.c.l.b16 %v91
    %v1569 = vunpack.c.h.b16 %v91
    %v1570 = vunpack.c.l.b16 %v92
    %v1571 = vunpack.c.h.b16 %v92
    %v1572 = vunpack.c.l.b16 %v93
    %v1573 = vunpack.c.h.b16 %v93
    %v1574 = vunpack.c.l.b16 %v94
    %v1575 = vunpack.c.h.b16 %v94
    %v1576 = vunpack.c.l.b16 %v95
    %v1577 = vunpack.c.h.b16 %v95
    %v1578 = vunpack.c.l.b16 %v96
    %v1579 = vunpack.c.h.b16 %v96
    %v1580 = vunpack.c.l.b16 %v97
    %v1581 = vunpack.c.h.b16 %v97
    %v1582 = vunpack.c.l.b16 %v98
    %v1583 = vunpack.c.h.b16 %v98
    %v1584 = vunpack.c.l.b16 %v99
    %v1585 = vunpack.c.h.b16 %v99
    %v1586 = vunpack.c.l.b16 %v100
    %v1587 = vunpack.c.h.b16 %v100
    %v1588 = vunpack.c.l.b16 %v101
    %v1589 = vunpack.c.h.b16 %v101
    %v1590 = vpack.c.b16 %v1530, %v1526
    %v1591 = vpack.c.b16 %v1531, %v1527
    %v1592 = vpack.c.b16 %v1532, %v1528
    %v1593 = vpack.c.b16 %v1533, %v1529
    %v1594 = vpack.c.b16 %v1538, %v1534
    %v1595 = vpack.c.b16 %v1539, %v1535
    %v1596 = vpack.c.b16 %v1540, %v1536
    %v1597 = vpack.c.b16 %v1541, %v1537
    %v1598 = vpack.c.b16 %v1546, %v1542
    %v1599 = vpack.c.b16 %v1547, %v1543
    %v1600 = vpack.c.b16 %v1548, %v1544
    %v1601 = vpack.c.b16 %v1549, %v1545
    %v1602 = vpack.c.b16 %v1554, %v1550
    %v1603 = vpack.c.b16 %v1555, %v1551
    %v1604 = vpack.c.b16 %v1556, %v1552
    %v1605 = vpack.c.b16 %v1557, %v1553
    %v1606 = vpack.c.b16 %v1562, %v1558
    %v1607 = vpack.c.b16 %v1563, %v1559
    %v1608 = vpack.c.b16 %v1564, %v1560
    %v1609 = vpack.c.b16 %v1565, %v1561
    %v1610 = vpack.c.b16 %v1570, %v1566
    %v1611 = vpack.c.b16 %v1571, %v1567
    %v1612 = vpack.c.b16 %v1572, %v1568
    %v1613 = vpack.c.b16 %v1573, %v1569
    %v1614 = vpack.c.b16 %v1578, %v1574
    %v1615 = vpack.c.b16 %v1579, %v1575
    %v1616 = vpack.c.b16 %v1580, %v1576
    %v1617 = vpack.c.b16 %v1581, %v1577
    %v1618 = vpack.c.b16 %v1586, %v1582
    %v1619 = vpack.c.b16 %v1587, %v1583
    %v1620 = vpack.c.b16 %v1588, %v1584
    %v1621 = vpack.c.b16 %v1589, %v1585
    %1654 = vmatprep.subr.bf16.mxu0 %v1619
    %1655 = vmatpush1.bf16.msra.mxu0 %v1618
    %1656 = vmatprep.subr.bf16.mxu0 %v1615
    %1657 = vmatpush1.bf16.msra.mxu0 %v1614
    %1658 = vmatprep.subr.bf16.mxu0 %v1611
    %1659 = vmatpush1.bf16.msra.mxu0 %v1610
    %1660 = vmatprep.subr.bf16.mxu0 %v1607
    %1661 = vmatpush1.bf16.msra.mxu0 %v1606
    %1662 = vmatprep.subr.bf16.mxu0 %v1603
    %1663 = vmatpush1.bf16.msra.mxu0 %v1602
    %1664 = vmatprep.subr.bf16.mxu0 %v1599
    %1665 = vmatpush1.bf16.msra.mxu0 %v1598
    %1666 = vmatprep.subr.bf16.mxu0 %v1595
    %1667 = vmatpush1.bf16.msra.mxu0 %v1594
    %1668 = vmatprep.subr.bf16.mxu0 %v1591
    %1669 = vmatpush1.bf16.msra.mxu0 %v1590
    %1670 = vmatprep.subr.bf16.mxu0 0
    %1671 = vmatpush2.bf16.msra.mxu0 0
    %1672 = vmatprep.subr.bf16.mxu0 0
    %1673 = vmatpush2.bf16.msra.mxu0 0
    %1674 = vmatprep.subr.bf16.mxu0 0
    %1675 = vmatpush2.bf16.msra.mxu0 0
    %1676 = vmatprep.subr.bf16.mxu0 0
    %1677 = vmatpush2.bf16.msra.mxu0 0
    %1678 = vmatprep.subr.bf16.mxu0 0
    %1679 = vmatpush2.bf16.msra.mxu0 0
    %1680 = vmatprep.subr.bf16.mxu0 0
    %1681 = vmatpush2.bf16.msra.mxu0 0
    %1682 = vmatprep.subr.bf16.mxu0 0
    %1683 = vmatpush2.bf16.msra.mxu0 0
    %1684 = vmatprep.subr.bf16.mxu0 0
    %1685 = vmatpush2.bf16.msra.mxu0 0
    %1686 = vmatprep.mubr.bf16.mxu0 0
    %1687 = vmatmul.mubr.bf16.gmra.mxu0 %v1472
    %v1688 = vpop.f32.mrf.mxu0
    %v1689 = vadd.f32 %v1477, %v1688
    %v1690 = vpop.f32.mrf.mxu0
    %v1691 = vadd.f32 %v1481, %v1690
    %v1692 = vpop.f32.mrf.mxu0
    %v1693 = vpop.f32.mrf.mxu0
    %1694 = vdwg.mxu0
    %1695 = vmatprep.subr.bf16.mxu0 %v1621
    %1696 = vmatpush1.bf16.msra.mxu0 %v1620
    %1697 = vmatprep.subr.bf16.mxu0 %v1617
    %1698 = vmatpush1.bf16.msra.mxu0 %v1616
    %1699 = vmatprep.subr.bf16.mxu0 %v1613
    %1700 = vmatpush1.bf16.msra.mxu0 %v1612
    %1701 = vmatprep.subr.bf16.mxu0 %v1609
    %1702 = vmatpush1.bf16.msra.mxu0 %v1608
    %1703 = vmatprep.subr.bf16.mxu0 %v1605
    %1704 = vmatpush1.bf16.msra.mxu0 %v1604
    %1705 = vmatprep.subr.bf16.mxu0 %v1601
    %1706 = vmatpush1.bf16.msra.mxu0 %v1600
    %1707 = vmatprep.subr.bf16.mxu0 %v1597
    %1708 = vmatpush1.bf16.msra.mxu0 %v1596
    %1709 = vmatprep.subr.bf16.mxu0 %v1593
    %1710 = vmatpush1.bf16.msra.mxu0 %v1592
    %1711 = vmatprep.subr.bf16.mxu0 0
    %1712 = vmatpush2.bf16.msra.mxu0 0
    %1713 = vmatprep.subr.bf16.mxu0 0
    %1714 = vmatpush2.bf16.msra.mxu0 0
    %1715 = vmatprep.subr.bf16.mxu0 0
    %1716 = vmatpush2.bf16.msra.mxu0 0
    %1717 = vmatprep.subr.bf16.mxu0 0
    %1718 = vmatpush2.bf16.msra.mxu0 0
    %1719 = vmatprep.subr.bf16.mxu0 0
    %1720 = vmatpush2.bf16.msra.mxu0 0
    %1721 = vmatprep.subr.bf16.mxu0 0
    %1722 = vmatpush2.bf16.msra.mxu0 0
    %1723 = vmatprep.subr.bf16.mxu0 0
    %1724 = vmatpush2.bf16.msra.mxu0 0
    %1725 = vmatprep.subr.bf16.mxu0 0
    %1726 = vmatpush2.bf16.msra.mxu0 0
    %1727 = vmatprep.mubr.bf16.mxu0 0
    %1728 = vmatmul.mubr.bf16.gmra.mxu0 %v1472
    %v1729 = vpop.f32.mrf.mxu0
    %v1730 = vadd.f32 %v1485, %v1729
    %v1731 = vpop.f32.mrf.mxu0
    %v1732 = vadd.f32 %v1489, %v1731
    %v1733 = vpop.f32.mrf.mxu0
    %v1734 = vpop.f32.mrf.mxu0
    %1735 = vdwg.mxu0
    %1736 = vst [vmem:[#allocation6] sm:$0xff] %v1689
    %1737 = vst [vmem:[#allocation6 + $0x8] sm:$0xff] %v1691
    %1738 = vst [vmem:[#allocation6 + $0x10] sm:$0xff] %v1730
    %1739 = vst [vmem:[#allocation6 + $0x18] sm:$0xff] %v1732
    // Predicated region
    $region18: #{tpu_custom_call.1} parent=1 // pred_check
      _
    $region19: #{tpu_custom_call.1} parent=1 // pred_check_branch
      %1741 = sbr.rel (0) target = $region21
    $region20: #{tpu_custom_call.1} parent=1 // pred_region
      %s1743 = ssub.s32 512, 512
      %1744 = vsyncadd [#allocation5], %s1743
      %s1746 = sshll.u32 [#allocation6], 4
      %s1747 = int_to_ptr.vmem [resolvable:$true] %s1746
      %1749 = dma.vmem_to_hbm [thread:$0]  %s1747, 512, %s3, [#allocation5]
    $region21: #{tpu_custom_call.1} parent=1 // pred_fallthru
      _
    // Predicated region
    $region22: #{tpu_custom_call.1} parent=1 // pred_check
      _
    $region23: #{tpu_custom_call.1} parent=1 // pred_check_branch
      %1751 = sbr.rel (0) target = $region25
    $region24: #{tpu_custom_call.1} parent=1 // pred_region
      %1752 = dma.done [#allocation5], 512
    $region25: #{tpu_custom_call.1} parent=1 // pred_fallthru
      _
    %1753 = vsyncpa [#allocation4], 1
    %1754 = vsyncpa [#allocation5], 1

</llo_original>
